<compile_context>
chip_gen: v5e
topology: v5e:2x2
jax: 0.10.0
libtpu: 0.0.40
codegen_flags: <defaults>
</compile_context>

<pallas_src>
import functools

import jax
import jax.numpy as jnp
from jax.experimental import pallas as pl
from jax.experimental.pallas import tpu as pltpu


# ----------------------------------------------------------------------------
# Kernels
# ----------------------------------------------------------------------------
def _sage_layer_kernel(a_ref, x_ref, ws_ref, wn_ref, b_ref, o_ref, *, apply_relu):
    """Single SAGEConv layer (used for layer 0, which has a different K)."""
    x = x_ref[...]                                                      # [N, Cin] bf16
    agg = jnp.dot(a_ref[...], x, preferred_element_type=jnp.float32)   # [N, Cin] f32
    out = (jnp.dot(x, ws_ref[...], preferred_element_type=jnp.float32)
           + jnp.dot(agg.astype(jnp.bfloat16), wn_ref[...],
                     preferred_element_type=jnp.float32)
           + b_ref[...])                                                # [N, Cout] f32
    if apply_relu:
        out = jnp.maximum(out, 0.0)
    o_ref[...] = out.astype(o_ref.dtype)                               # bf16 carry


def _sage_fused_kernel(a_ref, h0_ref, ws_ref, wn_ref, b_ref, o_ref):
    """One grid step == one SAGEConv layer (layers 1..L-1).

    o_ref has a constant index_map and doubles as the bf16 activation carry.
    A and the seed h0 are resident in VMEM across all layers.
    """
    l = pl.program_id(0)
    last = pl.num_programs(0) - 1

    # Seed the carry with the first-layer output.
    @pl.when(l == 0)
    def _():
        o_ref[...] = h0_ref[...]

    h = o_ref[...]                                                      # [N, C] bf16
    # Mean aggregation == row-normalized adjacency matmul (MXU, f32 acc).
    agg = jnp.dot(a_ref[...], h, preferred_element_type=jnp.float32)   # [N, C] f32
    # Self + neighbor transform with two dots (no runtime concat / VMEM temp).
    out = (jnp.dot(h, ws_ref[0], preferred_element_type=jnp.float32)
           + jnp.dot(agg.astype(jnp.bfloat16), wn_ref[0],
                     preferred_element_type=jnp.float32)
           + b_ref[0])                                                  # [N, C] f32

    # ReLU on hidden layers only (dropout is identity at inference).
    @pl.when(l != last)
    def _():
        o_ref[...] = jnp.maximum(out, 0.0).astype(o_ref.dtype)

    @pl.when(l == last)
    def _():
        o_ref[...] = out.astype(o_ref.dtype)


# ----------------------------------------------------------------------------
# Host-side helpers
# ----------------------------------------------------------------------------
def _round_up(x, m):
    return ((x + m - 1) // m) * m


def _pad_to(x, shape):
    return jnp.pad(x, [(0, t - s) for s, t in zip(x.shape, shape)])


def _vmem_limit_bytes(resident_bytes):
    # 3x headroom for double-buffered weight blocks / compiler scratch; never
    # below a safe default, never above what v5e/v6e physically allow.
    return int(min(max(3 * resident_bytes, 32 * 1024 * 1024), 100 * 1024 * 1024))


def build_norm_adjacency(edge_index, num_nodes):
    """Dense row-normalized adjacency: A[i, j] = 1/deg_in(i) if (j -> i) edge."""
    src, dst = edge_index[0], edge_index[1]
    adj = jnp.zeros((num_nodes, num_nodes), jnp.float32).at[dst, src].add(1.0)
    deg = jnp.maximum(adj.sum(axis=1, keepdims=True), 1.0)
    return adj / deg


def init_graphsage_params(key, in_channels, hidden_channels, out_channels, n_layers):
    dims = [in_channels] + [hidden_channels] * (n_layers - 1) + [out_channels]
    params = []
    for li in range(n_layers):
        c_in, c_out = dims[li], dims[li + 1]
        key, k1, k2, k3 = jax.random.split(key, 4)
        scale = 1.0 / jnp.sqrt(jnp.float32(c_in))
        w_self = jax.random.uniform(k1, (c_in, c_out), jnp.float32, -scale, scale)
        w_neigh = jax.random.uniform(k2, (c_in, c_out), jnp.float32, -scale, scale)
        bias = jax.random.uniform(k3, (1, c_out), jnp.float32, -scale, scale)
        params.append((w_self, w_neigh, bias))
    return params


def graphsage_forward(x, a_norm, params, *, single_buffer_resident=True):
    """n-layer GraphSAGE forward: first layer + fused remaining layers."""
    n, c_in = x.shape
    n_layers = len(params)
    c_out_final = params[-1][0].shape[1]

    # N padded to 256 (v6e/v7x MXU depth, harmless on v5e); channels to 128.
    n_pad = _round_up(n, 256)
    cin_pad = _round_up(c_in, 128)
    c_pad = _round_up(max(ws.shape[1] for ws, _, _ in params), 128)

    # Padded bf16 operands; padded rows/cols are exact zeros (no leakage into
    # real rows: A's columns for padded nodes are zero, final slice drops them).
    a_p = _pad_to(a_norm, (n_pad, n_pad)).astype(jnp.bfloat16)
    x_p = _pad_to(x, (n_pad, cin_pad)).astype(jnp.bfloat16)

    # ---------------- layer 0 (in_channels -> hidden), its own true K --------
    ws0, wn0, b0 = params[0]
    ws0_p = _pad_to(ws0, (cin_pad, c_pad)).astype(jnp.bfloat16)
    wn0_p = _pad_to(wn0, (cin_pad, c_pad)).astype(jnp.bfloat16)
    b0_p = _pad_to(b0.reshape(1, -1), (1, c_pad)).astype(jnp.float32)

    bytes0 = (a_p.size * 2 + x_p.size * 2 + ws0_p.size * 2 + wn0_p.size * 2
              + b0_p.size * 4 + n_pad * c_pad * 2)
    flops0 = 2 * n_pad * n_pad * cin_pad + 2 * 2 * n_pad * cin_pad * c_pad

    h = pl.pallas_call(
        functools.partial(_sage_layer_kernel, apply_relu=(n_layers > 1)),
        out_shape=jax.ShapeDtypeStruct((n_pad, c_pad), jnp.bfloat16),
        compiler_params=pltpu.CompilerParams(
            vmem_limit_bytes=_vmem_limit_bytes(bytes0)),
        cost_estimate=pl.CostEstimate(flops=flops0, transcendentals=0,
                                      bytes_accessed=int(bytes0)),
    )(a_p, x_p, ws0_p, wn0_p, b0_p)

    # ---------------- layers 1..L-1 fused: grid=(n_layers-1,) ----------------
    if n_layers > 1:
        n_rest = n_layers - 1
        ws_stack = jnp.stack(
            [_pad_to(ws, (c_pad, c_pad)) for ws, _, _ in params[1:]]
        ).astype(jnp.bfloat16)                                   # [L-1, C, C]
        wn_stack = jnp.stack(
            [_pad_to(wn, (c_pad, c_pad)) for _, wn, _ in params[1:]]
        ).astype(jnp.bfloat16)                                   # [L-1, C, C]
        b_stack = jnp.stack(
            [_pad_to(b.reshape(1, -1), (1, c_pad)) for _, _, b in params[1:]]
        ).astype(jnp.float32)                                    # [L-1, 1, C]

        def _const_spec(shape):
            index_map = lambda l: (0,) * len(shape)
            if single_buffer_resident:
                # Constant index_map -> double-buffering wastes VMEM.
                return pl.BlockSpec(shape, index_map, pipeline_mode=pl.Buffered(1))
            return pl.BlockSpec(shape, index_map)

        flops = n_rest * (2 * n_pad * n_pad * c_pad + 2 * 2 * n_pad * c_pad * c_pad)
        bytes_accessed = (a_p.size * 2 + 2 * n_pad * c_pad * 2
                          + ws_stack.size * 2 + wn_stack.size * 2 + b_stack.size * 4)
        resident = (a_p.size * 2                      # A (single-buffered)
                    + 2 * n_pad * c_pad * 2           # seed + carry (bf16)
                    + 2 * (2 * c_pad * c_pad * 2 + c_pad * 4))  # dbl-buf W/b

        h = pl.pallas_call(
            _sage_fused_kernel,
            out_shape=jax.ShapeDtypeStruct((n_pad, c_pad), jnp.bfloat16),
            grid=(n_rest,),
            in_specs=[
                _const_spec((n_pad, n_pad)),                           # A (resident)
                _const_spec((n_pad, c_pad)),                           # layer-0 seed
                pl.BlockSpec((1, c_pad, c_pad), lambda l: (l, 0, 0)),  # W_self[l]
                pl.BlockSpec((1, c_pad, c_pad), lambda l: (l, 0, 0)),  # W_neigh[l]
                pl.BlockSpec((1, 1, c_pad), lambda l: (l, 0, 0)),      # b[l]
            ],
            out_specs=pl.BlockSpec((n_pad, c_pad), lambda l: (0, 0)),  # carry + out
            compiler_params=pltpu.CompilerParams(
                dimension_semantics=("arbitrary",),   # layer axis carries state
                vmem_limit_bytes=_vmem_limit_bytes(resident)),
            cost_estimate=pl.CostEstimate(flops=int(flops), transcendentals=0,
                                          bytes_accessed=int(bytes_accessed)),
        )(a_p, h, ws_stack, wn_stack, b_stack)

    # Upcast the bf16 carry once, outside the kernel, and drop padding.
    return h[:n, :c_out_final].astype(jnp.float32)


# ----------------------------------------------------------------------------
# References
# ----------------------------------------------------------------------------
def ref_forward_f32(x, a_norm, params):
    h = x
    for li, (ws, wn, b) in enumerate(params):
        h = h @ ws + (a_norm @ h) @ wn + b
        if li != len(params) - 1:
            h = jnp.maximum(h, 0.0)
    return h


def ref_forward_quantized(x, a_norm, params):
    """Mirrors the kernel arithmetic: bf16 inputs / f32 accumulate / bf16 carry."""
    a_bf = a_norm.astype(jnp.bfloat16)
    h = x.astype(jnp.float32)
    for li, (ws, wn, b) in enumerate(params):
        h_bf = h.astype(jnp.bfloat16)
        agg = jnp.dot(a_bf, h_bf, preferred_element_type=jnp.float32)
        h = (jnp.dot(h_bf, ws.astype(jnp.bfloat16),
                     preferred_element_type=jnp.float32)
             + jnp.dot(agg.astype(jnp.bfloat16), wn.astype(jnp.bfloat16),
                       preferred_element_type=jnp.float32)
             + b)
        if li != len(params) - 1:
            h = jnp.maximum(h, 0.0)
        h = h.astype(jnp.bfloat16).astype(jnp.float32)   # bf16 carry, as in kernel
    return h


if __name__ == "__main__":
    key = jax.random.PRNGKey(0)

    num_nodes = 16
    in_channels = 8
    hidden_channels = 32
    out_channels = 16
    n_layers = 3

    key, kx, ke = jax.random.split(key, 3)
    x = jax.random.normal(kx, (num_nodes, in_channels), jnp.float32)

    num_edges = 48
    edge_index = jax.random.randint(ke, (2, num_edges), 0, num_nodes, jnp.int32)

    a_norm = build_norm_adjacency(edge_index, num_nodes)
    params = init_graphsage_params(key, in_channels, hidden_channels,
                                   out_channels, n_layers)

    try:
        out = jax.block_until_ready(
            graphsage_forward(x, a_norm, params, single_buffer_resident=True))
    except Exception:
        # Fallback if this JAX build rejects pipeline_mode=pl.Buffered(1).
        out = jax.block_until_ready(
            graphsage_forward(x, a_norm, params, single_buffer_resident=False))

    ref_q = ref_forward_quantized(x, a_norm, params)   # same quantization path
    ref_f = ref_forward_f32(x, a_norm, params)         # pure-f32 sanity check

    assert out.shape == (num_nodes, out_channels)
    assert jnp.allclose(out, ref_q, atol=5e-3, rtol=5e-3)
    assert jnp.allclose(out, ref_f, atol=1e-1, rtol=1e-1)

    print("KERNEL_OK")
</pallas_src>

<mosaic_0001>
module attributes {stable_mosaic.version = 11 : i64} {
  func.func @_sage_layer_kernel(%arg0: memref<256x256xbf16, #tpu.memory_space<vmem>>, %arg1: memref<256x128xbf16, #tpu.memory_space<vmem>>, %arg2: memref<128x128xbf16, #tpu.memory_space<vmem>>, %arg3: memref<128x128xbf16, #tpu.memory_space<vmem>>, %arg4: memref<1x128xf32, #tpu.memory_space<vmem>>, %arg5: memref<256x128xbf16, #tpu.memory_space<vmem>>) attributes {dimension_semantics = [], scalar_prefetch = 0 : i64, scratch_operands = 0 : i64, tpu.core_type = #tpu.core_type<tc>} {
    %c0 = arith.constant 0 : index
    %c0_0 = arith.constant 0 : index
    %0 = vector.load %arg1[%c0, %c0_0] : memref<256x128xbf16, #tpu.memory_space<vmem>>, vector<256x128xbf16>
    %c0_1 = arith.constant 0 : index
    %c0_2 = arith.constant 0 : index
    %1 = vector.load %arg0[%c0_1, %c0_2] : memref<256x256xbf16, #tpu.memory_space<vmem>>, vector<256x256xbf16>
    %cst = arith.constant dense<0.000000e+00> : vector<256x128xf32>
    %2 = tpu.matmul %1, %0, %cst {dimension_numbers = #tpu.dot_dimension_numbers<[1], [0], [0], [1], [0, 0, 1, 1], [], []>} : vector<256x256xbf16>, vector<256x128xbf16>, vector<256x128xf32> -> vector<256x128xf32>
    %c0_3 = arith.constant 0 : index
    %c0_4 = arith.constant 0 : index
    %3 = vector.load %arg2[%c0_3, %c0_4] : memref<128x128xbf16, #tpu.memory_space<vmem>>, vector<128x128xbf16>
    %cst_5 = arith.constant dense<0.000000e+00> : vector<256x128xf32>
    %4 = tpu.matmul %0, %3, %cst_5 {dimension_numbers = #tpu.dot_dimension_numbers<[1], [0], [0], [1], [0, 0, 1, 1], [], []>} : vector<256x128xbf16>, vector<128x128xbf16>, vector<256x128xf32> -> vector<256x128xf32>
    %5 = arith.truncf %2 : vector<256x128xf32> to vector<256x128xbf16>
    %c0_6 = arith.constant 0 : index
    %c0_7 = arith.constant 0 : index
    %6 = vector.load %arg3[%c0_6, %c0_7] : memref<128x128xbf16, #tpu.memory_space<vmem>>, vector<128x128xbf16>
    %cst_8 = arith.constant dense<0.000000e+00> : vector<256x128xf32>
    %7 = tpu.matmul %5, %6, %cst_8 {dimension_numbers = #tpu.dot_dimension_numbers<[1], [0], [0], [1], [0, 0, 1, 1], [], []>} : vector<256x128xbf16>, vector<128x128xbf16>, vector<256x128xf32> -> vector<256x128xf32>
    %8 = arith.addf %4, %7 : vector<256x128xf32>
    %c0_9 = arith.constant 0 : index
    %c0_10 = arith.constant 0 : index
    %9 = vector.load %arg4[%c0_9, %c0_10] : memref<1x128xf32, #tpu.memory_space<vmem>>, vector<1x128xf32>
    %10 = vector.broadcast %9 : vector<1x128xf32> to vector<256x128xf32>
    %11 = arith.addf %8, %10 : vector<256x128xf32>
    %cst_11 = arith.constant 0.000000e+00 : f32
    %12 = vector.broadcast %cst_11 : f32 to vector<256x128xf32>
    %13 = arith.maximumf %11, %12 : vector<256x128xf32>
    %14 = arith.truncf %13 : vector<256x128xf32> to vector<256x128xbf16>
    %c0_12 = arith.constant 0 : index
    %c0_13 = arith.constant 0 : index
    %15 = vector.load %arg5[%c0_12, %c0_13] : memref<256x128xbf16, #tpu.memory_space<vmem>>, vector<256x128xbf16>
    tpu.vector_store %arg5[%c0_12, %c0_13], %14 {strides = array<i32>} : memref<256x128xbf16, #tpu.memory_space<vmem>>, vector<256x128xbf16>,
    return
  }
}

module attributes {stable_mosaic.version = 11 : i64} {
  func.func @_sage_layer_kernel(%arg0: memref<256x256xbf16, #tpu.memory_space<vmem>>, %arg1: memref<256x128xbf16, #tpu.memory_space<vmem>>, %arg2: memref<128x128xbf16, #tpu.memory_space<vmem>>, %arg3: memref<128x128xbf16, #tpu.memory_space<vmem>>, %arg4: memref<1x128xf32, #tpu.memory_space<vmem>>, %arg5: memref<256x128xbf16, #tpu.memory_space<vmem>>) attributes {dimension_semantics = [], scalar_prefetch = 0 : i64, scratch_operands = 0 : i64, tpu.core_type = #tpu.core_type<tc>} {
    %c0 = arith.constant 0 : index
    %c0_0 = arith.constant 0 : index
    %0 = vector.load %arg1[%c0, %c0_0] : memref<256x128xbf16, #tpu.memory_space<vmem>>, vector<256x128xbf16>
    %c0_1 = arith.constant 0 : index
    %c0_2 = arith.constant 0 : index
    %1 = vector.load %arg0[%c0_1, %c0_2] : memref<256x256xbf16, #tpu.memory_space<vmem>>, vector<256x256xbf16>
    %cst = arith.constant dense<0.000000e+00> : vector<256x128xf32>
    %2 = tpu.matmul %1, %0, %cst {dimension_numbers = #tpu.dot_dimension_numbers<[1], [0], [0], [1], [0, 0, 1, 1], [], []>} : vector<256x256xbf16>, vector<256x128xbf16>, vector<256x128xf32> -> vector<256x128xf32>
    %c0_3 = arith.constant 0 : index
    %c0_4 = arith.constant 0 : index
    %3 = vector.load %arg2[%c0_3, %c0_4] : memref<128x128xbf16, #tpu.memory_space<vmem>>, vector<128x128xbf16>
    %cst_5 = arith.constant dense<0.000000e+00> : vector<256x128xf32>
    %4 = tpu.matmul %0, %3, %cst_5 {dimension_numbers = #tpu.dot_dimension_numbers<[1], [0], [0], [1], [0, 0, 1, 1], [], []>} : vector<256x128xbf16>, vector<128x128xbf16>, vector<256x128xf32> -> vector<256x128xf32>
    %5 = arith.truncf %2 : vector<256x128xf32> to vector<256x128xbf16>
    %c0_6 = arith.constant 0 : index
    %c0_7 = arith.constant 0 : index
    %6 = vector.load %arg3[%c0_6, %c0_7] : memref<128x128xbf16, #tpu.memory_space<vmem>>, vector<128x128xbf16>
    %cst_8 = arith.constant dense<0.000000e+00> : vector<256x128xf32>
    %7 = tpu.matmul %5, %6, %cst_8 {dimension_numbers = #tpu.dot_dimension_numbers<[1], [0], [0], [1], [0, 0, 1, 1], [], []>} : vector<256x128xbf16>, vector<128x128xbf16>, vector<256x128xf32> -> vector<256x128xf32>
    %8 = arith.addf %4, %7 : vector<256x128xf32>
    %c0_9 = arith.constant 0 : index
    %c0_10 = arith.constant 0 : index
    %9 = vector.load %arg4[%c0_9, %c0_10] : memref<1x128xf32, #tpu.memory_space<vmem>>, vector<1x128xf32>
    %10 = vector.broadcast %9 : vector<1x128xf32> to vector<256x128xf32>
    %11 = arith.addf %8, %10 : vector<256x128xf32>
    %cst_11 = arith.constant 0.000000e+00 : f32
    %12 = vector.broadcast %cst_11 : f32 to vector<256x128xf32>
    %13 = arith.maximumf %11, %12 : vector<256x128xf32>
    %14 = arith.truncf %13 : vector<256x128xf32> to vector<256x128xbf16>
    %c0_12 = arith.constant 0 : index
    %c0_13 = arith.constant 0 : index
    %15 = vector.load %arg5[%c0_12, %c0_13] : memref<256x128xbf16, #tpu.memory_space<vmem>>, vector<256x128xbf16>
    tpu.vector_store %arg5[%c0_12, %c0_13], %14 {strides = array<i32>} : memref<256x128xbf16, #tpu.memory_space<vmem>>, vector<256x128xbf16>,
    return
  }
}

</mosaic_0001>

<llo_original>
// kernel: tpu_custom_call.1
$region0: #{tpu_custom_call.1}
  #allocation0 [shape = 'u32[]', space=smem, size = 0x4, offset = 0x4, fixed_abs, tag = 'smem constant byte address 0x4 - core index']
  #allocation1 [shape = 'u32[72,128]{1,0:T(1,128)}', space=vmem, size = 0x9000, scoped, tag = 'internal scratch']
  %s0 = inlined_call_operand.hbm [shape: bf16[256,256], index: 0, kind: input, shape index: {}]
  %s1 = inlined_call_operand.hbm [shape: bf16[256,128], index: 1, kind: input, shape index: {}]
  %s2 = inlined_call_operand.hbm [shape: bf16[128,128], index: 2, kind: input, shape index: {}]
  %s3 = inlined_call_operand.hbm [shape: bf16[128,128], index: 3, kind: input, shape index: {}]
  %s4 = inlined_call_operand.vmem [shape: f32[1,128], index: 4, kind: input, shape index: {}]
  %s5 = inlined_call_operand.hbm [shape: bf16[256,128], index: 5, kind: output, shape index: {}]
  %s6 = sld [smem:[#allocation0]]
  $region46: #{tpu_custom_call.1} parent=0
    _
  %s8 = ssub.s32 1, %s6
  %s9 = scalar_select 0, %s8, %s6
  $region1: #{tpu_custom_call.1} parent=0
    #allocation2 [shape = 'u8[131072]{0}', space=vmem, size = 0x20000, scoped, tag = 'input window, operand 0, single buffered']
    #allocation3 [shape = 's32[1]{0}', space=sflag, size = 0x4, scoped, tag = 'scoped memory for tpu_custom_call.1']
    #allocation4 [shape = 's32[1]{0}', space=sflag, size = 0x4, scoped, tag = 'scoped memory for tpu_custom_call.1']
    #allocation5 [shape = 'u8[65536]{0}', space=vmem, size = 0x10000, scoped, tag = 'input window, operand 1, single buffered']
    #allocation6 [shape = 's32[1]{0}', space=sflag, size = 0x4, scoped, tag = 'scoped memory for tpu_custom_call.1']
    #allocation7 [shape = 'u8[32768]{0}', space=vmem, size = 0x8000, scoped, tag = 'input window, operand 2, single buffered']
    #allocation8 [shape = 'u8[32768]{0}', space=vmem, size = 0x8000, scoped, tag = 'input window, operand 3, single buffered']
    #allocation9 [shape = 's32[1]{0}', space=sflag, size = 0x4, scoped, tag = 'scoped memory for tpu_custom_call.1']
    #allocation10 [shape = 'u8[65536]{0}', space=vmem, size = 0x10000, scoped, tag = 'output window, operand 0, single buffered']
    %10 = vsyncpa [#allocation3], 0
    %11 = vsyncpa [#allocation6], 0
    %12 = vsyncpa [#allocation9], 0
    %13 = vsyncpa [#allocation4], 0
    // Predicated region
    $region2: #{tpu_custom_call.1} parent=1 // pred_check
      _
    $region3: #{tpu_custom_call.1} parent=1 // pred_check_branch
      %15 = sbr.rel (0) target = $region5
    $region4: #{tpu_custom_call.1} parent=1 // pred_region
      %17 = vsyncadd [#allocation3], 0
      %s18 = sshll.u32 %s0, 4
      %s19 = int_to_ptr.hbm [resolvable:$true] %s18
      %s20 = sshll.u32 [#allocation2], 4
      %s21 = int_to_ptr.vmem [resolvable:$true] %s20
      %26 = dma.hbm_to_vmem [thread:$0]  %s19, 4096, %s21, [#allocation3], 128, 128, 8
    $region5: #{tpu_custom_call.1} parent=1 // pred_fallthru
      _
    // Predicated region
    $region6: #{tpu_custom_call.1} parent=1 // pred_check
      _
    $region7: #{tpu_custom_call.1} parent=1 // pred_check_branch
      %28 = sbr.rel (0) target = $region9
    $region8: #{tpu_custom_call.1} parent=1 // pred_region
      %30 = vsyncadd [#allocation6], 0
      %s31 = sshll.u32 %s1, 4
      %s32 = int_to_ptr.hbm [resolvable:$true] %s31
      %s33 = sshll.u32 [#allocation5], 4
      %s34 = int_to_ptr.vmem [resolvable:$true] %s33
      %39 = dma.hbm_to_vmem [thread:$0]  %s32, 2048, %s34, [#allocation6], 64, 64, 4
    $region9: #{tpu_custom_call.1} parent=1 // pred_fallthru
      _
    // Predicated region
    $region10: #{tpu_custom_call.1} parent=1 // pred_check
      _
    $region11: #{tpu_custom_call.1} parent=1 // pred_check_branch
      %41 = sbr.rel (0) target = $region13
    $region12: #{tpu_custom_call.1} parent=1 // pred_region
      %43 = vsyncadd [#allocation6], 0
      %s44 = sshll.u32 %s2, 4
      %s45 = int_to_ptr.hbm [resolvable:$true] %s44
      %s46 = sshll.u32 [#allocation7], 4
      %s47 = int_to_ptr.vmem [resolvable:$true] %s46
      %52 = dma.hbm_to_vmem [thread:$0]  %s45, 1024, %s47, [#allocation6], 64, 64, 4
    $region13: #{tpu_custom_call.1} parent=1 // pred_fallthru
      _
    // Predicated region
    $region14: #{tpu_custom_call.1} parent=1 // pred_check
      _
    $region15: #{tpu_custom_call.1} parent=1 // pred_check_branch
      %54 = sbr.rel (0) target = $region17
    $region16: #{tpu_custom_call.1} parent=1 // pred_region
      %56 = vsyncadd [#allocation9], 0
      %s57 = sshll.u32 %s3, 4
      %s58 = int_to_ptr.hbm [resolvable:$true] %s57
      %s59 = sshll.u32 [#allocation8], 4
      %s60 = int_to_ptr.vmem [resolvable:$true] %s59
      %65 = dma.hbm_to_vmem [thread:$0]  %s58, 1024, %s60, [#allocation9], 64, 64, 4
    $region17: #{tpu_custom_call.1} parent=1 // pred_fallthru
      _
    // Predicated region
    $region18: #{tpu_custom_call.1} parent=1 // pred_check
      _
    $region19: #{tpu_custom_call.1} parent=1 // pred_check_branch
      %67 = sbr.rel (0) target = $region21
    $region20: #{tpu_custom_call.1} parent=1 // pred_region
      _
    $region21: #{tpu_custom_call.1} parent=1 // pred_fallthru
      _
    // Predicated region
    $region22: #{tpu_custom_call.1} parent=1 // pred_check
      _
    $region23: #{tpu_custom_call.1} parent=1 // pred_check_branch
      %69 = sbr.rel (0) target = $region25
    $region24: #{tpu_custom_call.1} parent=1 // pred_region
      %71 = dma.done [#allocation3], 4096
    $region25: #{tpu_custom_call.1} parent=1 // pred_fallthru
      _
    // Predicated region
    $region26: #{tpu_custom_call.1} parent=1 // pred_check
      _
    $region27: #{tpu_custom_call.1} parent=1 // pred_check_branch
      %73 = sbr.rel (0) target = $region29
    $region28: #{tpu_custom_call.1} parent=1 // pred_region
      %75 = dma.done [#allocation6], 2048
    $region29: #{tpu_custom_call.1} parent=1 // pred_fallthru
      _
    // Predicated region
    $region30: #{tpu_custom_call.1} parent=1 // pred_check
      _
    $region31: #{tpu_custom_call.1} parent=1 // pred_check_branch
      %77 = sbr.rel (0) target = $region33
    $region32: #{tpu_custom_call.1} parent=1 // pred_region
      %79 = dma.done [#allocation6], 1024
    $region33: #{tpu_custom_call.1} parent=1 // pred_fallthru
      _
    // Predicated region
    $region34: #{tpu_custom_call.1} parent=1 // pred_check
      _
    $region35: #{tpu_custom_call.1} parent=1 // pred_check_branch
      %81 = sbr.rel (0) target = $region37
    $region36: #{tpu_custom_call.1} parent=1 // pred_region
      %83 = dma.done [#allocation9], 1024
    $region37: #{tpu_custom_call.1} parent=1 // pred_fallthru
      _
    %v84 = vld [vmem:[#allocation5] sm:$0xf]
    %v85 = vld [vmem:[#allocation5 + $0x4] sm:$0xf]
    %v86 = vld [vmem:[#allocation5 + $0x8] sm:$0xf]
    %v87 = vld [vmem:[#allocation5 + $0xc] sm:$0xf]
    %v88 = vld [vmem:[#allocation5 + $0x10] sm:$0xf]
    %v89 = vld [vmem:[#allocation5 + $0x14] sm:$0xf]
    %v90 = vld [vmem:[#allocation5 + $0x18] sm:$0xf]
    %v91 = vld [vmem:[#allocation5 + $0x1c] sm:$0xf]
    %v92 = vld [vmem:[#allocation5 + $0x20] sm:$0xf]
    %v93 = vld [vmem:[#allocation5 + $0x24] sm:$0xf]
    %v94 = vld [vmem:[#allocation5 + $0x28] sm:$0xf]
    %v95 = vld [vmem:[#allocation5 + $0x2c] sm:$0xf]
    %v96 = vld [vmem:[#allocation5 + $0x30] sm:$0xf]
    %v97 = vld [vmem:[#allocation5 + $0x34] sm:$0xf]
    %v98 = vld [vmem:[#allocation5 + $0x38] sm:$0xf]
    %v99 = vld [vmem:[#allocation5 + $0x3c] sm:$0xf]
    %v100 = vld [vmem:[#allocation5 + $0x40] sm:$0xf]
    %v101 = vld [vmem:[#allocation5 + $0x44] sm:$0xf]
    %v102 = vld [vmem:[#allocation5 + $0x48] sm:$0xf]
    %v103 = vld [vmem:[#allocation5 + $0x4c] sm:$0xf]
    %v104 = vld [vmem:[#allocation5 + $0x50] sm:$0xf]
    %v105 = vld [vmem:[#allocation5 + $0x54] sm:$0xf]
    %v106 = vld [vmem:[#allocation5 + $0x58] sm:$0xf]
    %v107 = vld [vmem:[#allocation5 + $0x5c] sm:$0xf]
    %v108 = vld [vmem:[#allocation5 + $0x60] sm:$0xf]
    %v109 = vld [vmem:[#allocation5 + $0x64] sm:$0xf]
    %v110 = vld [vmem:[#allocation5 + $0x68] sm:$0xf]
    %v111 = vld [vmem:[#allocation5 + $0x6c] sm:$0xf]
    %v112 = vld [vmem:[#allocation5 + $0x70] sm:$0xf]
    %v113 = vld [vmem:[#allocation5 + $0x74] sm:$0xf]
    %v114 = vld [vmem:[#allocation5 + $0x78] sm:$0xf]
    %v115 = vld [vmem:[#allocation5 + $0x7c] sm:$0xf]
    %v116 = vld [vmem:[#allocation2] sm:$0xff]
    %v117 = vld [vmem:[#allocation2 + $0x8] sm:$0xff]
    %v118 = vld [vmem:[#allocation2 + $0x10] sm:$0xff]
    %v119 = vld [vmem:[#allocation2 + $0x18] sm:$0xff]
    %v120 = vld [vmem:[#allocation2 + $0x20] sm:$0xff]
    %v121 = vld [vmem:[#allocation2 + $0x28] sm:$0xff]
    %v122 = vld [vmem:[#allocation2 + $0x30] sm:$0xff]
    %v123 = vld [vmem:[#allocation2 + $0x38] sm:$0xff]
    %v124 = vld [vmem:[#allocation2 + $0x40] sm:$0xff]
    %v125 = vld [vmem:[#allocation2 + $0x48] sm:$0xff]
    %v126 = vld [vmem:[#allocation2 + $0x50] sm:$0xff]
    %v127 = vld [vmem:[#allocation2 + $0x58] sm:$0xff]
    %v128 = vld [vmem:[#allocation2 + $0x60] sm:$0xff]
    %v129 = vld [vmem:[#allocation2 + $0x68] sm:$0xff]
    %v130 = vld [vmem:[#allocation2 + $0x70] sm:$0xff]
    %v131 = vld [vmem:[#allocation2 + $0x78] sm:$0xff]
    %v132 = vld [vmem:[#allocation2 + $0x80] sm:$0xff]
    %v133 = vld [vmem:[#allocation2 + $0x88] sm:$0xff]
    %v134 = vld [vmem:[#allocation2 + $0x90] sm:$0xff]
    %v135 = vld [vmem:[#allocation2 + $0x98] sm:$0xff]
    %v136 = vld [vmem:[#allocation2 + $0xa0] sm:$0xff]
    %v137 = vld [vmem:[#allocation2 + $0xa8] sm:$0xff]
    %v138 = vld [vmem:[#allocation2 + $0xb0] sm:$0xff]
    %v139 = vld [vmem:[#allocation2 + $0xb8] sm:$0xff]
    %v140 = vld [vmem:[#allocation2 + $0xc0] sm:$0xff]
    %v141 = vld [vmem:[#allocation2 + $0xc8] sm:$0xff]
    %v142 = vld [vmem:[#allocation2 + $0xd0] sm:$0xff]
    %v143 = vld [vmem:[#allocation2 + $0xd8] sm:$0xff]
    %v144 = vld [vmem:[#allocation2 + $0xe0] sm:$0xff]
    %v145 = vld [vmem:[#allocation2 + $0xe8] sm:$0xff]
    %v146 = vld [vmem:[#allocation2 + $0xf0] sm:$0xff]
    %v147 = vld [vmem:[#allocation2 + $0xf8] sm:$0xff]
    %v180 = vunpack.c.l.b16 %v116
    %v181 = vunpack.c.h.b16 %v116
    %v182 = vunpack.c.l.b16 %v117
    %v183 = vunpack.c.h.b16 %v117
    %v184 = vunpack.c.l.b16 %v118
    %v185 = vunpack.c.h.b16 %v118
    %v186 = vunpack.c.l.b16 %v119
    %v187 = vunpack.c.h.b16 %v119
    %v188 = vunpack.c.l.b16 %v120
    %v189 = vunpack.c.h.b16 %v120
    %v190 = vunpack.c.l.b16 %v121
    %v191 = vunpack.c.h.b16 %v121
    %v192 = vunpack.c.l.b16 %v122
    %v193 = vunpack.c.h.b16 %v122
    %v194 = vunpack.c.l.b16 %v123
    %v195 = vunpack.c.h.b16 %v123
    %v196 = vunpack.c.l.b16 %v124
    %v197 = vunpack.c.h.b16 %v124
    %v198 = vunpack.c.l.b16 %v125
    %v199 = vunpack.c.h.b16 %v125
    %v200 = vunpack.c.l.b16 %v126
    %v201 = vunpack.c.h.b16 %v126
    %v202 = vunpack.c.l.b16 %v127
    %v203 = vunpack.c.h.b16 %v127
    %v204 = vunpack.c.l.b16 %v128
    %v205 = vunpack.c.h.b16 %v128
    %v206 = vunpack.c.l.b16 %v129
    %v207 = vunpack.c.h.b16 %v129
    %v208 = vunpack.c.l.b16 %v130
    %v209 = vunpack.c.h.b16 %v130
    %v210 = vunpack.c.l.b16 %v131
    %v211 = vunpack.c.h.b16 %v131
    %v212 = vunpack.c.l.b16 %v132
    %v213 = vunpack.c.h.b16 %v132
    %v214 = vunpack.c.l.b16 %v133
    %v215 = vunpack.c.h.b16 %v133
    %v216 = vunpack.c.l.b16 %v134
    %v217 = vunpack.c.h.b16 %v134
    %v218 = vunpack.c.l.b16 %v135
    %v219 = vunpack.c.h.b16 %v135
    %v220 = vunpack.c.l.b16 %v136
    %v221 = vunpack.c.h.b16 %v136
    %v222 = vunpack.c.l.b16 %v137
    %v223 = vunpack.c.h.b16 %v137
    %v224 = vunpack.c.l.b16 %v138
    %v225 = vunpack.c.h.b16 %v138
    %v226 = vunpack.c.l.b16 %v139
    %v227 = vunpack.c.h.b16 %v139
    %v228 = vunpack.c.l.b16 %v140
    %v229 = vunpack.c.h.b16 %v140
    %v230 = vunpack.c.l.b16 %v141
    %v231 = vunpack.c.h.b16 %v141
    %v232 = vunpack.c.l.b16 %v142
    %v233 = vunpack.c.h.b16 %v142
    %v234 = vunpack.c.l.b16 %v143
    %v235 = vunpack.c.h.b16 %v143
    %v236 = vunpack.c.l.b16 %v144
    %v237 = vunpack.c.h.b16 %v144
    %v238 = vunpack.c.l.b16 %v145
    %v239 = vunpack.c.h.b16 %v145
    %v240 = vunpack.c.l.b16 %v146
    %v241 = vunpack.c.h.b16 %v146
    %v242 = vunpack.c.l.b16 %v147
    %v243 = vunpack.c.h.b16 %v147
    %v244 = vpack.c.b16 %v182, %v180
    %v245 = vpack.c.b16 %v183, %v181
    %v246 = vpack.c.b16 %v186, %v184
    %v247 = vpack.c.b16 %v187, %v185
    %v248 = vpack.c.b16 %v190, %v188
    %v249 = vpack.c.b16 %v191, %v189
    %v250 = vpack.c.b16 %v194, %v192
    %v251 = vpack.c.b16 %v195, %v193
    %v252 = vpack.c.b16 %v198, %v196
    %v253 = vpack.c.b16 %v199, %v197
    %v254 = vpack.c.b16 %v202, %v200
    %v255 = vpack.c.b16 %v203, %v201
    %v256 = vpack.c.b16 %v206, %v204
    %v257 = vpack.c.b16 %v207, %v205
    %v258 = vpack.c.b16 %v210, %v208
    %v259 = vpack.c.b16 %v211, %v209
    %v260 = vpack.c.b16 %v214, %v212
    %v261 = vpack.c.b16 %v215, %v213
    %v262 = vpack.c.b16 %v218, %v216
    %v263 = vpack.c.b16 %v219, %v217
    %v264 = vpack.c.b16 %v222, %v220
    %v265 = vpack.c.b16 %v223, %v221
    %v266 = vpack.c.b16 %v226, %v224
    %v267 = vpack.c.b16 %v227, %v225
    %v268 = vpack.c.b16 %v230, %v228
    %v269 = vpack.c.b16 %v231, %v229
    %v270 = vpack.c.b16 %v234, %v232
    %v271 = vpack.c.b16 %v235, %v233
    %v272 = vpack.c.b16 %v238, %v236
    %v273 = vpack.c.b16 %v239, %v237
    %v274 = vpack.c.b16 %v242, %v240
    %v275 = vpack.c.b16 %v243, %v241
    %v340 = vunpack.c.l.b16 %v84
    %v341 = vunpack.c.l.b16 %v85
    %v342 = vunpack.c.l.b16 %v86
    %v343 = vunpack.c.l.b16 %v87
    %v344 = vunpack.c.l.b16 %v88
    %v345 = vunpack.c.l.b16 %v89
    %v346 = vunpack.c.l.b16 %v90
    %v347 = vunpack.c.l.b16 %v91
    %v348 = vunpack.c.l.b16 %v92
    %v349 = vunpack.c.l.b16 %v93
    %v350 = vunpack.c.l.b16 %v94
    %v351 = vunpack.c.l.b16 %v95
    %v352 = vunpack.c.l.b16 %v96
    %v353 = vunpack.c.l.b16 %v97
    %v354 = vunpack.c.l.b16 %v98
    %v355 = vunpack.c.l.b16 %v99
    %v356 = vunpack.c.l.b16 %v100
    %v357 = vunpack.c.l.b16 %v101
    %v358 = vunpack.c.l.b16 %v102
    %v359 = vunpack.c.l.b16 %v103
    %v360 = vunpack.c.l.b16 %v104
    %v361 = vunpack.c.l.b16 %v105
    %v362 = vunpack.c.l.b16 %v106
    %v363 = vunpack.c.l.b16 %v107
    %v364 = vunpack.c.l.b16 %v108
    %v365 = vunpack.c.l.b16 %v109
    %v366 = vunpack.c.l.b16 %v110
    %v367 = vunpack.c.l.b16 %v111
    %v368 = vunpack.c.l.b16 %v112
    %v369 = vunpack.c.l.b16 %v113
    %v370 = vunpack.c.l.b16 %v114
    %v371 = vunpack.c.l.b16 %v115
    %v372 = vpack.c.b16 %v341, %v340
    %v373 = vpack.c.b16 %v343, %v342
    %v374 = vpack.c.b16 %v345, %v344
    %v375 = vpack.c.b16 %v347, %v346
    %v376 = vpack.c.b16 %v349, %v348
    %v377 = vpack.c.b16 %v351, %v350
    %v378 = vpack.c.b16 %v353, %v352
    %v379 = vpack.c.b16 %v355, %v354
    %v380 = vpack.c.b16 %v357, %v356
    %v381 = vpack.c.b16 %v359, %v358
    %v382 = vpack.c.b16 %v361, %v360
    %v383 = vpack.c.b16 %v363, %v362
    %v384 = vpack.c.b16 %v365, %v364
    %v385 = vpack.c.b16 %v367, %v366
    %v386 = vpack.c.b16 %v369, %v368
    %v387 = vpack.c.b16 %v371, %v370
    %404 = vmatpush.bf16.msra.mxu0 %v379
    %405 = vmatpush.bf16.msra.mxu0 %v378
    %406 = vmatpush.bf16.msra.mxu0 %v377
    %407 = vmatpush.bf16.msra.mxu0 %v376
    %408 = vmatpush.bf16.msra.mxu0 %v375
    %409 = vmatpush.bf16.msra.mxu0 %v374
    %410 = vmatpush.bf16.msra.mxu0 %v373
    %411 = vmatpush.bf16.msra.mxu0 %v372
    %412 = vmatmul.bf16.gmra.mxu0 %v244
    %v413 = vpop.f32.mrf.mxu0
    %v414 = vadd.f32 0.0, %v413
    %v415 = vpop.f32.mrf.mxu0
    %v416 = vadd.f32 0.0, %v415
    %417 = vmatmul.bf16.gmra.mxu0 %v246
    %v418 = vpop.f32.mrf.mxu0
    %v419 = vadd.f32 0.0, %v418
    %v420 = vpop.f32.mrf.mxu0
    %v421 = vadd.f32 0.0, %v420
    %422 = vmatmul.bf16.gmra.mxu0 %v248
    %v423 = vpop.f32.mrf.mxu0
    %v424 = vadd.f32 0.0, %v423
    %v425 = vpop.f32.mrf.mxu0
    %v426 = vadd.f32 0.0, %v425
    %427 = vmatmul.bf16.gmra.mxu0 %v250
    %v428 = vpop.f32.mrf.mxu0
    %v429 = vadd.f32 0.0, %v428
    %v430 = vpop.f32.mrf.mxu0
    %v431 = vadd.f32 0.0, %v430
    %432 = vmatmul.bf16.gmra.mxu0 %v252
    %v433 = vpop.f32.mrf.mxu0
    %v434 = vadd.f32 0.0, %v433
    %v435 = vpop.f32.mrf.mxu0
    %v436 = vadd.f32 0.0, %v435
    %437 = vmatmul.bf16.gmra.mxu0 %v254
    %v438 = vpop.f32.mrf.mxu0
    %v439 = vadd.f32 0.0, %v438
    %v440 = vpop.f32.mrf.mxu0
    %v441 = vadd.f32 0.0, %v440
    %442 = vmatmul.bf16.gmra.mxu0 %v256
    %v443 = vpop.f32.mrf.mxu0
    %v444 = vadd.f32 0.0, %v443
    %v445 = vpop.f32.mrf.mxu0
    %v446 = vadd.f32 0.0, %v445
    %447 = vmatmul.bf16.gmra.mxu0 %v258
    %v448 = vpop.f32.mrf.mxu0
    %v449 = vadd.f32 0.0, %v448
    %v450 = vpop.f32.mrf.mxu0
    %v451 = vadd.f32 0.0, %v450
    %452 = vmatmul.bf16.gmra.mxu0 %v260
    %v453 = vpop.f32.mrf.mxu0
    %v454 = vadd.f32 0.0, %v453
    %v455 = vpop.f32.mrf.mxu0
    %v456 = vadd.f32 0.0, %v455
    %457 = vmatmul.bf16.gmra.mxu0 %v262
    %v458 = vpop.f32.mrf.mxu0
    %v459 = vadd.f32 0.0, %v458
    %v460 = vpop.f32.mrf.mxu0
    %v461 = vadd.f32 0.0, %v460
    %462 = vmatmul.bf16.gmra.mxu0 %v264
    %v463 = vpop.f32.mrf.mxu0
    %v464 = vadd.f32 0.0, %v463
    %v465 = vpop.f32.mrf.mxu0
    %v466 = vadd.f32 0.0, %v465
    %467 = vmatmul.bf16.gmra.mxu0 %v266
    %v468 = vpop.f32.mrf.mxu0
    %v469 = vadd.f32 0.0, %v468
    %v470 = vpop.f32.mrf.mxu0
    %v471 = vadd.f32 0.0, %v470
    %472 = vmatmul.bf16.gmra.mxu0 %v268
    %v473 = vpop.f32.mrf.mxu0
    %v474 = vadd.f32 0.0, %v473
    %v475 = vpop.f32.mrf.mxu0
    %v476 = vadd.f32 0.0, %v475
    %477 = vmatmul.bf16.gmra.mxu0 %v270
    %v478 = vpop.f32.mrf.mxu0
    %v479 = vadd.f32 0.0, %v478
    %v480 = vpop.f32.mrf.mxu0
    %v481 = vadd.f32 0.0, %v480
    %482 = vmatmul.bf16.gmra.mxu0 %v272
    %v483 = vpop.f32.mrf.mxu0
    %v484 = vadd.f32 0.0, %v483
    %v485 = vpop.f32.mrf.mxu0
    %v486 = vadd.f32 0.0, %v485
    %487 = vmatmul.bf16.gmra.mxu0 %v274
    %v488 = vpop.f32.mrf.mxu0
    %v489 = vadd.f32 0.0, %v488
    %v490 = vpop.f32.mrf.mxu0
    %v491 = vadd.f32 0.0, %v490
    %492 = vdwg.mxu0
    %493 = vmatpush.bf16.msra.mxu0 %v387
    %494 = vmatpush.bf16.msra.mxu0 %v386
    %495 = vmatpush.bf16.msra.mxu0 %v385
    %496 = vmatpush.bf16.msra.mxu0 %v384
    %497 = vmatpush.bf16.msra.mxu0 %v383
    %498 = vmatpush.bf16.msra.mxu0 %v382
    %499 = vmatpush.bf16.msra.mxu0 %v381
    %500 = vmatpush.bf16.msra.mxu0 %v380
    %501 = vmatmul.bf16.gmra.mxu0 %v245
    %v502 = vpop.f32.mrf.mxu0
    %v503 = vadd.f32 %v414, %v502
    %v504 = vpop.f32.mrf.mxu0
    %v505 = vadd.f32 %v416, %v504
    %506 = vmatmul.bf16.gmra.mxu0 %v247
    %v507 = vpop.f32.mrf.mxu0
    %v508 = vadd.f32 %v419, %v507
    %v509 = vpop.f32.mrf.mxu0
    %v510 = vadd.f32 %v421, %v509
    %511 = vmatmul.bf16.gmra.mxu0 %v249
    %v512 = vpop.f32.mrf.mxu0
    %v513 = vadd.f32 %v424, %v512
    %v514 = vpop.f32.mrf.mxu0
    %v515 = vadd.f32 %v426, %v514
    %516 = vmatmul.bf16.gmra.mxu0 %v251
    %v517 = vpop.f32.mrf.mxu0
    %v518 = vadd.f32 %v429, %v517
    %v519 = vpop.f32.mrf.mxu0
    %v520 = vadd.f32 %v431, %v519
    %521 = vmatmul.bf16.gmra.mxu0 %v253
    %v522 = vpop.f32.mrf.mxu0
    %v523 = vadd.f32 %v434, %v522
    %v524 = vpop.f32.mrf.mxu0
    %v525 = vadd.f32 %v436, %v524
    %526 = vmatmul.bf16.gmra.mxu0 %v255
    %v527 = vpop.f32.mrf.mxu0
    %v528 = vadd.f32 %v439, %v527
    %v529 = vpop.f32.mrf.mxu0
    %v530 = vadd.f32 %v441, %v529
    %531 = vmatmul.bf16.gmra.mxu0 %v257
    %v532 = vpop.f32.mrf.mxu0
    %v533 = vadd.f32 %v444, %v532
    %v534 = vpop.f32.mrf.mxu0
    %v535 = vadd.f32 %v446, %v534
    %536 = vmatmul.bf16.gmra.mxu0 %v259
    %v537 = vpop.f32.mrf.mxu0
    %v538 = vadd.f32 %v449, %v537
    %v539 = vpop.f32.mrf.mxu0
    %v540 = vadd.f32 %v451, %v539
    %541 = vmatmul.bf16.gmra.mxu0 %v261
    %v542 = vpop.f32.mrf.mxu0
    %v543 = vadd.f32 %v454, %v542
    %v544 = vpop.f32.mrf.mxu0
    %v545 = vadd.f32 %v456, %v544
    %546 = vmatmul.bf16.gmra.mxu0 %v263
    %v547 = vpop.f32.mrf.mxu0
    %v548 = vadd.f32 %v459, %v547
    %v549 = vpop.f32.mrf.mxu0
    %v550 = vadd.f32 %v461, %v549
    %551 = vmatmul.bf16.gmra.mxu0 %v265
    %v552 = vpop.f32.mrf.mxu0
    %v553 = vadd.f32 %v464, %v552
    %v554 = vpop.f32.mrf.mxu0
    %v555 = vadd.f32 %v466, %v554
    %556 = vmatmul.bf16.gmra.mxu0 %v267
    %v557 = vpop.f32.mrf.mxu0
    %v558 = vadd.f32 %v469, %v557
    %v559 = vpop.f32.mrf.mxu0
    %v560 = vadd.f32 %v471, %v559
    %561 = vmatmul.bf16.gmra.mxu0 %v269
    %v562 = vpop.f32.mrf.mxu0
    %v563 = vadd.f32 %v474, %v562
    %v564 = vpop.f32.mrf.mxu0
    %v565 = vadd.f32 %v476, %v564
    %566 = vmatmul.bf16.gmra.mxu0 %v271
    %v567 = vpop.f32.mrf.mxu0
    %v568 = vadd.f32 %v479, %v567
    %v569 = vpop.f32.mrf.mxu0
    %v570 = vadd.f32 %v481, %v569
    %571 = vmatmul.bf16.gmra.mxu0 %v273
    %v572 = vpop.f32.mrf.mxu0
    %v573 = vadd.f32 %v484, %v572
    %v574 = vpop.f32.mrf.mxu0
    %v575 = vadd.f32 %v486, %v574
    %576 = vmatmul.bf16.gmra.mxu0 %v275
    %v577 = vpop.f32.mrf.mxu0
    %v578 = vadd.f32 %v489, %v577
    %v579 = vpop.f32.mrf.mxu0
    %v580 = vadd.f32 %v491, %v579
    %581 = vdwg.mxu0
    %v582 = vld [vmem:[#allocation7] sm:$0xf]
    %v583 = vld [vmem:[#allocation7 + $0x4] sm:$0xf]
    %v584 = vld [vmem:[#allocation7 + $0x8] sm:$0xf]
    %v585 = vld [vmem:[#allocation7 + $0xc] sm:$0xf]
    %v586 = vld [vmem:[#allocation7 + $0x10] sm:$0xf]
    %v587 = vld [vmem:[#allocation7 + $0x14] sm:$0xf]
    %v588 = vld [vmem:[#allocation7 + $0x18] sm:$0xf]
    %v589 = vld [vmem:[#allocation7 + $0x1c] sm:$0xf]
    %v590 = vld [vmem:[#allocation7 + $0x20] sm:$0xf]
    %v591 = vld [vmem:[#allocation7 + $0x24] sm:$0xf]
    %v592 = vld [vmem:[#allocation7 + $0x28] sm:$0xf]
    %v593 = vld [vmem:[#allocation7 + $0x2c] sm:$0xf]
    %v594 = vld [vmem:[#allocation7 + $0x30] sm:$0xf]
    %v595 = vld [vmem:[#allocation7 + $0x34] sm:$0xf]
    %v596 = vld [vmem:[#allocation7 + $0x38] sm:$0xf]
    %v597 = vld [vmem:[#allocation7 + $0x3c] sm:$0xf]
    %v598 = vpack.c.bf16 %v505, %v503
    %v599 = vpack.c.bf16 %v510, %v508
    %v600 = vpack.c.bf16 %v515, %v513
    %v601 = vpack.c.bf16 %v520, %v518
    %v602 = vpack.c.bf16 %v525, %v523
    %v603 = vpack.c.bf16 %v530, %v528
    %v604 = vpack.c.bf16 %v535, %v533
    %v605 = vpack.c.bf16 %v540, %v538
    %v606 = vpack.c.bf16 %v545, %v543
    %v607 = vpack.c.bf16 %v550, %v548
    %v608 = vpack.c.bf16 %v555, %v553
    %v609 = vpack.c.bf16 %v560, %v558
    %v610 = vpack.c.bf16 %v565, %v563
    %v611 = vpack.c.bf16 %v570, %v568
    %v612 = vpack.c.bf16 %v575, %v573
    %v613 = vpack.c.bf16 %v580, %v578
    %v614 = vld [vmem:[#allocation8] sm:$0xf]
    %v615 = vld [vmem:[#allocation8 + $0x4] sm:$0xf]
    %v616 = vld [vmem:[#allocation8 + $0x8] sm:$0xf]
    %v617 = vld [vmem:[#allocation8 + $0xc] sm:$0xf]
    %v618 = vld [vmem:[#allocation8 + $0x10] sm:$0xf]
    %v619 = vld [vmem:[#allocation8 + $0x14] sm:$0xf]
    %v620 = vld [vmem:[#allocation8 + $0x18] sm:$0xf]
    %v621 = vld [vmem:[#allocation8 + $0x1c] sm:$0xf]
    %v622 = vld [vmem:[#allocation8 + $0x20] sm:$0xf]
    %v623 = vld [vmem:[#allocation8 + $0x24] sm:$0xf]
    %v624 = vld [vmem:[#allocation8 + $0x28] sm:$0xf]
    %v625 = vld [vmem:[#allocation8 + $0x2c] sm:$0xf]
    %v626 = vld [vmem:[#allocation8 + $0x30] sm:$0xf]
    %v627 = vld [vmem:[#allocation8 + $0x34] sm:$0xf]
    %v628 = vld [vmem:[#allocation8 + $0x38] sm:$0xf]
    %v629 = vld [vmem:[#allocation8 + $0x3c] sm:$0xf]
    %v646 = vunpack.c.l.b16 %v614
    %v647 = vunpack.c.l.b16 %v615
    %v648 = vunpack.c.l.b16 %v616
    %v649 = vunpack.c.l.b16 %v617
    %v650 = vunpack.c.l.b16 %v618
    %v651 = vunpack.c.l.b16 %v619
    %v652 = vunpack.c.l.b16 %v620
    %v653 = vunpack.c.l.b16 %v621
    %v654 = vunpack.c.l.b16 %v622
    %v655 = vunpack.c.l.b16 %v623
    %v656 = vunpack.c.l.b16 %v624
    %v657 = vunpack.c.l.b16 %v625
    %v658 = vunpack.c.l.b16 %v626
    %v659 = vunpack.c.l.b16 %v627
    %v660 = vunpack.c.l.b16 %v628
    %v661 = vunpack.c.l.b16 %v629
    %v662 = vpack.c.b16 %v647, %v646
    %v663 = vpack.c.b16 %v649, %v648
    %v664 = vpack.c.b16 %v651, %v650
    %v665 = vpack.c.b16 %v653, %v652
    %v666 = vpack.c.b16 %v655, %v654
    %v667 = vpack.c.b16 %v657, %v656
    %v668 = vpack.c.b16 %v659, %v658
    %v669 = vpack.c.b16 %v661, %v660
    %678 = vmatpush.bf16.msra.mxu0 %v669
    %679 = vmatpush.bf16.msra.mxu0 %v668
    %680 = vmatpush.bf16.msra.mxu0 %v667
    %681 = vmatpush.bf16.msra.mxu0 %v666
    %682 = vmatpush.bf16.msra.mxu0 %v665
    %683 = vmatpush.bf16.msra.mxu0 %v664
    %684 = vmatpush.bf16.msra.mxu0 %v663
    %685 = vmatpush.bf16.msra.mxu0 %v662
    %686 = vmatmul.bf16.gmra.mxu0 %v598
    %v687 = vpop.f32.mrf.mxu0
    %v688 = vadd.f32 0.0, %v687
    %v689 = vpop.f32.mrf.mxu0
    %v690 = vadd.f32 0.0, %v689
    %691 = vmatmul.bf16.gmra.mxu0 %v599
    %v692 = vpop.f32.mrf.mxu0
    %v693 = vadd.f32 0.0, %v692
    %v694 = vpop.f32.mrf.mxu0
    %v695 = vadd.f32 0.0, %v694
    %696 = vmatmul.bf16.gmra.mxu0 %v600
    %v697 = vpop.f32.mrf.mxu0
    %v698 = vadd.f32 0.0, %v697
    %v699 = vpop.f32.mrf.mxu0
    %v700 = vadd.f32 0.0, %v699
    %701 = vmatmul.bf16.gmra.mxu0 %v601
    %v702 = vpop.f32.mrf.mxu0
    %v703 = vadd.f32 0.0, %v702
    %v704 = vpop.f32.mrf.mxu0
    %v705 = vadd.f32 0.0, %v704
    %706 = vmatmul.bf16.gmra.mxu0 %v602
    %v707 = vpop.f32.mrf.mxu0
    %v708 = vadd.f32 0.0, %v707
    %v709 = vpop.f32.mrf.mxu0
    %v710 = vadd.f32 0.0, %v709
    %711 = vmatmul.bf16.gmra.mxu0 %v603
    %v712 = vpop.f32.mrf.mxu0
    %v713 = vadd.f32 0.0, %v712
    %v714 = vpop.f32.mrf.mxu0
    %v715 = vadd.f32 0.0, %v714
    %716 = vmatmul.bf16.gmra.mxu0 %v604
    %v717 = vpop.f32.mrf.mxu0
    %v718 = vadd.f32 0.0, %v717
    %v719 = vpop.f32.mrf.mxu0
    %v720 = vadd.f32 0.0, %v719
    %721 = vmatmul.bf16.gmra.mxu0 %v605
    %v722 = vpop.f32.mrf.mxu0
    %v723 = vadd.f32 0.0, %v722
    %v724 = vpop.f32.mrf.mxu0
    %v725 = vadd.f32 0.0, %v724
    %726 = vmatmul.bf16.gmra.mxu0 %v606
    %v727 = vpop.f32.mrf.mxu0
    %v728 = vadd.f32 0.0, %v727
    %v729 = vpop.f32.mrf.mxu0
    %v730 = vadd.f32 0.0, %v729
    %731 = vmatmul.bf16.gmra.mxu0 %v607
    %v732 = vpop.f32.mrf.mxu0
    %v733 = vadd.f32 0.0, %v732
    %v734 = vpop.f32.mrf.mxu0
    %v735 = vadd.f32 0.0, %v734
    %736 = vmatmul.bf16.gmra.mxu0 %v608
    %v737 = vpop.f32.mrf.mxu0
    %v738 = vadd.f32 0.0, %v737
    %v739 = vpop.f32.mrf.mxu0
    %v740 = vadd.f32 0.0, %v739
    %741 = vmatmul.bf16.gmra.mxu0 %v609
    %v742 = vpop.f32.mrf.mxu0
    %v743 = vadd.f32 0.0, %v742
    %v744 = vpop.f32.mrf.mxu0
    %v745 = vadd.f32 0.0, %v744
    %746 = vmatmul.bf16.gmra.mxu0 %v610
    %v747 = vpop.f32.mrf.mxu0
    %v748 = vadd.f32 0.0, %v747
    %v749 = vpop.f32.mrf.mxu0
    %v750 = vadd.f32 0.0, %v749
    %751 = vmatmul.bf16.gmra.mxu0 %v611
    %v752 = vpop.f32.mrf.mxu0
    %v753 = vadd.f32 0.0, %v752
    %v754 = vpop.f32.mrf.mxu0
    %v755 = vadd.f32 0.0, %v754
    %756 = vmatmul.bf16.gmra.mxu0 %v612
    %v757 = vpop.f32.mrf.mxu0
    %v758 = vadd.f32 0.0, %v757
    %v759 = vpop.f32.mrf.mxu0
    %v760 = vadd.f32 0.0, %v759
    %761 = vmatmul.bf16.gmra.mxu0 %v613
    %v762 = vpop.f32.mrf.mxu0
    %v763 = vadd.f32 0.0, %v762
    %v764 = vpop.f32.mrf.mxu0
    %v765 = vadd.f32 0.0, %v764
    %766 = vdwg.mxu0
    %v783 = vunpack.c.l.b16 %v582
    %v784 = vunpack.c.l.b16 %v583
    %v785 = vunpack.c.l.b16 %v584
    %v786 = vunpack.c.l.b16 %v585
    %v787 = vunpack.c.l.b16 %v586
    %v788 = vunpack.c.l.b16 %v587
    %v789 = vunpack.c.l.b16 %v588
    %v790 = vunpack.c.l.b16 %v589
    %v791 = vunpack.c.l.b16 %v590
    %v792 = vunpack.c.l.b16 %v591
    %v793 = vunpack.c.l.b16 %v592
    %v794 = vunpack.c.l.b16 %v593
    %v795 = vunpack.c.l.b16 %v594
    %v796 = vunpack.c.l.b16 %v595
    %v797 = vunpack.c.l.b16 %v596
    %v798 = vunpack.c.l.b16 %v597
    %v799 = vpack.c.b16 %v784, %v783
    %v800 = vpack.c.b16 %v786, %v785
    %v801 = vpack.c.b16 %v788, %v787
    %v802 = vpack.c.b16 %v790, %v789
    %v803 = vpack.c.b16 %v792, %v791
    %v804 = vpack.c.b16 %v794, %v793
    %v805 = vpack.c.b16 %v796, %v795
    %v806 = vpack.c.b16 %v798, %v797
    %815 = vmatpush.bf16.msra.mxu0 %v806
    %816 = vmatpush.bf16.msra.mxu0 %v805
    %817 = vmatpush.bf16.msra.mxu0 %v804
    %818 = vmatpush.bf16.msra.mxu0 %v803
    %819 = vmatpush.bf16.msra.mxu0 %v802
    %820 = vmatpush.bf16.msra.mxu0 %v801
    %821 = vmatpush.bf16.msra.mxu0 %v800
    %822 = vmatpush.bf16.msra.mxu0 %v799
    %823 = vmatmul.bf16.gmra.mxu0 %v372
    %v824 = vpop.f32.mrf.mxu0
    %v825 = vadd.f32 %v688, %v824
    %v826 = vpop.f32.mrf.mxu0
    %v827 = vadd.f32 %v690, %v826
    %828 = vmatmul.bf16.gmra.mxu0 %v373
    %v829 = vpop.f32.mrf.mxu0
    %v830 = vadd.f32 %v693, %v829
    %v831 = vpop.f32.mrf.mxu0
    %v832 = vadd.f32 %v695, %v831
    %833 = vmatmul.bf16.gmra.mxu0 %v374
    %v834 = vpop.f32.mrf.mxu0
    %v835 = vadd.f32 %v698, %v834
    %v836 = vpop.f32.mrf.mxu0
    %v837 = vadd.f32 %v700, %v836
    %838 = vmatmul.bf16.gmra.mxu0 %v375
    %v839 = vpop.f32.mrf.mxu0
    %v840 = vadd.f32 %v703, %v839
    %v841 = vpop.f32.mrf.mxu0
    %v842 = vadd.f32 %v705, %v841
    %843 = vmatmul.bf16.gmra.mxu0 %v376
    %v844 = vpop.f32.mrf.mxu0
    %v845 = vadd.f32 %v708, %v844
    %v846 = vpop.f32.mrf.mxu0
    %v847 = vadd.f32 %v710, %v846
    %848 = vmatmul.bf16.gmra.mxu0 %v377
    %v849 = vpop.f32.mrf.mxu0
    %v850 = vadd.f32 %v713, %v849
    %v851 = vpop.f32.mrf.mxu0
    %v852 = vadd.f32 %v715, %v851
    %853 = vmatmul.bf16.gmra.mxu0 %v378
    %v854 = vpop.f32.mrf.mxu0
    %v855 = vadd.f32 %v718, %v854
    %v856 = vpop.f32.mrf.mxu0
    %v857 = vadd.f32 %v720, %v856
    %858 = vmatmul.bf16.gmra.mxu0 %v379
    %v859 = vpop.f32.mrf.mxu0
    %v860 = vadd.f32 %v723, %v859
    %v861 = vpop.f32.mrf.mxu0
    %v862 = vadd.f32 %v725, %v861
    %863 = vmatmul.bf16.gmra.mxu0 %v380
    %v864 = vpop.f32.mrf.mxu0
    %v865 = vadd.f32 %v728, %v864
    %v866 = vpop.f32.mrf.mxu0
    %v867 = vadd.f32 %v730, %v866
    %868 = vmatmul.bf16.gmra.mxu0 %v381
    %v869 = vpop.f32.mrf.mxu0
    %v870 = vadd.f32 %v733, %v869
    %v871 = vpop.f32.mrf.mxu0
    %v872 = vadd.f32 %v735, %v871
    %873 = vmatmul.bf16.gmra.mxu0 %v382
    %v874 = vpop.f32.mrf.mxu0
    %v875 = vadd.f32 %v738, %v874
    %v876 = vpop.f32.mrf.mxu0
    %v877 = vadd.f32 %v740, %v876
    %878 = vmatmul.bf16.gmra.mxu0 %v383
    %v879 = vpop.f32.mrf.mxu0
    %v880 = vadd.f32 %v743, %v879
    %v881 = vpop.f32.mrf.mxu0
    %v882 = vadd.f32 %v745, %v881
    %883 = vmatmul.bf16.gmra.mxu0 %v384
    %v884 = vpop.f32.mrf.mxu0
    %v885 = vadd.f32 %v748, %v884
    %v886 = vpop.f32.mrf.mxu0
    %v887 = vadd.f32 %v750, %v886
    %888 = vmatmul.bf16.gmra.mxu0 %v385
    %v889 = vpop.f32.mrf.mxu0
    %v890 = vadd.f32 %v753, %v889
    %v891 = vpop.f32.mrf.mxu0
    %v892 = vadd.f32 %v755, %v891
    %893 = vmatmul.bf16.gmra.mxu0 %v386
    %v894 = vpop.f32.mrf.mxu0
    %v895 = vadd.f32 %v758, %v894
    %v896 = vpop.f32.mrf.mxu0
    %v897 = vadd.f32 %v760, %v896
    %898 = vmatmul.bf16.gmra.mxu0 %v387
    %v899 = vpop.f32.mrf.mxu0
    %v900 = vadd.f32 %v763, %v899
    %v901 = vpop.f32.mrf.mxu0
    %v902 = vadd.f32 %v765, %v901
    %903 = vdwg.mxu0
    %v904 = vld [vmem:[%s4] sm:$0x1]
    %v906 = vperm.slane %v904, 0
    %v908 = vadd.f32 %v825, %v906
    %v909 = vadd.f32 %v827, %v906
    %v910 = vadd.f32 %v830, %v906
    %v911 = vadd.f32 %v832, %v906
    %v912 = vadd.f32 %v835, %v906
    %v913 = vadd.f32 %v837, %v906
    %v914 = vadd.f32 %v840, %v906
    %v915 = vadd.f32 %v842, %v906
    %v916 = vadd.f32 %v845, %v906
    %v917 = vadd.f32 %v847, %v906
    %v918 = vadd.f32 %v850, %v906
    %v919 = vadd.f32 %v852, %v906
    %v920 = vadd.f32 %v855, %v906
    %v921 = vadd.f32 %v857, %v906
    %v922 = vadd.f32 %v860, %v906
    %v923 = vadd.f32 %v862, %v906
    %v924 = vadd.f32 %v865, %v906
    %v925 = vadd.f32 %v867, %v906
    %v926 = vadd.f32 %v870, %v906
    %v927 = vadd.f32 %v872, %v906
    %v928 = vadd.f32 %v875, %v906
    %v929 = vadd.f32 %v877, %v906
    %v930 = vadd.f32 %v880, %v906
    %v931 = vadd.f32 %v882, %v906
    %v932 = vadd.f32 %v885, %v906
    %v933 = vadd.f32 %v887, %v906
    %v934 = vadd.f32 %v890, %v906
    %v935 = vadd.f32 %v892, %v906
    %v936 = vadd.f32 %v895, %v906
    %v937 = vadd.f32 %v897, %v906
    %v938 = vadd.f32 %v900, %v906
    %v939 = vadd.f32 %v902, %v906
    %v940 = vmax.f32 %v908, 0.0
    %v941 = vmax.f32 %v909, 0.0
    %v942 = vmax.f32 %v910, 0.0
    %v943 = vmax.f32 %v911, 0.0
    %v944 = vmax.f32 %v912, 0.0
    %v945 = vmax.f32 %v913, 0.0
    %v946 = vmax.f32 %v914, 0.0
    %v947 = vmax.f32 %v915, 0.0
    %v948 = vmax.f32 %v916, 0.0
    %v949 = vmax.f32 %v917, 0.0
    %v950 = vmax.f32 %v918, 0.0
    %v951 = vmax.f32 %v919, 0.0
    %v952 = vmax.f32 %v920, 0.0
    %v953 = vmax.f32 %v921, 0.0
    %v954 = vmax.f32 %v922, 0.0
    %v955 = vmax.f32 %v923, 0.0
    %v956 = vmax.f32 %v924, 0.0
    %v957 = vmax.f32 %v925, 0.0
    %v958 = vmax.f32 %v926, 0.0
    %v959 = vmax.f32 %v927, 0.0
    %v960 = vmax.f32 %v928, 0.0
    %v961 = vmax.f32 %v929, 0.0
    %v962 = vmax.f32 %v930, 0.0
    %v963 = vmax.f32 %v931, 0.0
    %v964 = vmax.f32 %v932, 0.0
    %v965 = vmax.f32 %v933, 0.0
    %v966 = vmax.f32 %v934, 0.0
    %v967 = vmax.f32 %v935, 0.0
    %v968 = vmax.f32 %v936, 0.0
    %v969 = vmax.f32 %v937, 0.0
    %v970 = vmax.f32 %v938, 0.0
    %v971 = vmax.f32 %v939, 0.0
    %v972 = vpack.c.bf16 %v940, %v940
    %v973 = vpack.c.bf16 %v941, %v941
    %v974 = vpack.c.bf16 %v942, %v942
    %v975 = vpack.c.bf16 %v943, %v943
    %v976 = vpack.c.bf16 %v944, %v944
    %v977 = vpack.c.bf16 %v945, %v945
    %v978 = vpack.c.bf16 %v946, %v946
    %v979 = vpack.c.bf16 %v947, %v947
    %v980 = vpack.c.bf16 %v948, %v948
    %v981 = vpack.c.bf16 %v949, %v949
    %v982 = vpack.c.bf16 %v950, %v950
    %v983 = vpack.c.bf16 %v951, %v951
    %v984 = vpack.c.bf16 %v952, %v952
    %v985 = vpack.c.bf16 %v953, %v953
    %v986 = vpack.c.bf16 %v954, %v954
    %v987 = vpack.c.bf16 %v955, %v955
    %v988 = vpack.c.bf16 %v956, %v956
    %v989 = vpack.c.bf16 %v957, %v957
    %v990 = vpack.c.bf16 %v958, %v958
    %v991 = vpack.c.bf16 %v959, %v959
    %v992 = vpack.c.bf16 %v960, %v960
    %v993 = vpack.c.bf16 %v961, %v961
    %v994 = vpack.c.bf16 %v962, %v962
    %v995 = vpack.c.bf16 %v963, %v963
    %v996 = vpack.c.bf16 %v964, %v964
    %v997 = vpack.c.bf16 %v965, %v965
    %v998 = vpack.c.bf16 %v966, %v966
    %v999 = vpack.c.bf16 %v967, %v967
    %v1000 = vpack.c.bf16 %v968, %v968
    %v1001 = vpack.c.bf16 %v969, %v969
    %v1002 = vpack.c.bf16 %v970, %v970
    %v1003 = vpack.c.bf16 %v971, %v971
    %1004 = vst [vmem:[#allocation10] sm:$0xf] %v972
    %1005 = vst [vmem:[#allocation10 + $0x4] sm:$0xf] %v973
    %1006 = vst [vmem:[#allocation10 + $0x8] sm:$0xf] %v974
    %1007 = vst [vmem:[#allocation10 + $0xc] sm:$0xf] %v975
    %1008 = vst [vmem:[#allocation10 + $0x10] sm:$0xf] %v976
    %1009 = vst [vmem:[#allocation10 + $0x14] sm:$0xf] %v977
    %1010 = vst [vmem:[#allocation10 + $0x18] sm:$0xf] %v978
    %1011 = vst [vmem:[#allocation10 + $0x1c] sm:$0xf] %v979
    %1012 = vst [vmem:[#allocation10 + $0x20] sm:$0xf] %v980
    %1013 = vst [vmem:[#allocation10 + $0x24] sm:$0xf] %v981
    %1014 = vst [vmem:[#allocation10 + $0x28] sm:$0xf] %v982
    %1015 = vst [vmem:[#allocation10 + $0x2c] sm:$0xf] %v983
    %1016 = vst [vmem:[#allocation10 + $0x30] sm:$0xf] %v984
    %1017 = vst [vmem:[#allocation10 + $0x34] sm:$0xf] %v985
    %1018 = vst [vmem:[#allocation10 + $0x38] sm:$0xf] %v986
    %1019 = vst [vmem:[#allocation10 + $0x3c] sm:$0xf] %v987
    %1020 = vst [vmem:[#allocation10 + $0x40] sm:$0xf] %v988
    %1021 = vst [vmem:[#allocation10 + $0x44] sm:$0xf] %v989
    %1022 = vst [vmem:[#allocation10 + $0x48] sm:$0xf] %v990
    %1023 = vst [vmem:[#allocation10 + $0x4c] sm:$0xf] %v991
    %1024 = vst [vmem:[#allocation10 + $0x50] sm:$0xf] %v992
    %1025 = vst [vmem:[#allocation10 + $0x54] sm:$0xf] %v993
    %1026 = vst [vmem:[#allocation10 + $0x58] sm:$0xf] %v994
    %1027 = vst [vmem:[#allocation10 + $0x5c] sm:$0xf] %v995
    %1028 = vst [vmem:[#allocation10 + $0x60] sm:$0xf] %v996
    %1029 = vst [vmem:[#allocation10 + $0x64] sm:$0xf] %v997
    %1030 = vst [vmem:[#allocation10 + $0x68] sm:$0xf] %v998
    %1031 = vst [vmem:[#allocation10 + $0x6c] sm:$0xf] %v999
    %1032 = vst [vmem:[#allocation10 + $0x70] sm:$0xf] %v1000
    %1033 = vst [vmem:[#allocation10 + $0x74] sm:$0xf] %v1001
    %1034 = vst [vmem:[#allocation10 + $0x78] sm:$0xf] %v1002
    %1035 = vst [vmem:[#allocation10 + $0x7c] sm:$0xf] %v1003
    // Predicated region
    $region38: #{tpu_custom_call.1} parent=1 // pred_check
      _
    $region39: #{tpu_custom_call.1} parent=1 // pred_check_branch
      %1037 = sbr.rel (0) target = $region41
    $region40: #{tpu_custom_call.1} parent=1 // pred_region
      %1039 = vsyncadd [#allocation4], 0
      %s1040 = sshll.u32 [#allocation10], 4
      %s1041 = int_to_ptr.vmem [resolvable:$true] %s1040
      %s1042 = sshll.u32 %s5, 4
      %s1043 = int_to_ptr.hbm [resolvable:$true] %s1042
      %1048 = dma.vmem_to_hbm [thread:$0]  %s1041, 2048, %s1043, [#allocation4], 64, 64, 4
    $region41: #{tpu_custom_call.1} parent=1 // pred_fallthru
      _
    // Predicated region
    $region42: #{tpu_custom_call.1} parent=1 // pred_check
      _
    $region43: #{tpu_custom_call.1} parent=1 // pred_check_branch
      %1050 = sbr.rel (0) target = $region45
    $region44: #{tpu_custom_call.1} parent=1 // pred_region
      %1052 = dma.done [#allocation4], 2048
    $region45: #{tpu_custom_call.1} parent=1 // pred_fallthru
      _
    %1053 = vsyncpa [#allocation3], 1
    %1054 = vsyncpa [#allocation6], 1
    %1055 = vsyncpa [#allocation9], 1
    %1056 = vsyncpa [#allocation4], 1

// kernel: tpu_custom_call.1
$region0: #{tpu_custom_call.1}
  #allocation0 [shape = 'u32[]', space=smem, size = 0x4, offset = 0x4, fixed_abs, tag = 'smem constant byte address 0x4 - core index']
  #allocation1 [shape = 'u32[72,128]{1,0:T(1,128)}', space=vmem, size = 0x9000, scoped, tag = 'internal scratch']
  %s0 = inlined_call_operand.hbm [shape: bf16[256,256], index: 0, kind: input, shape index: {}]
  %s1 = inlined_call_operand.hbm [shape: bf16[256,128], index: 1, kind: input, shape index: {}]
  %s2 = inlined_call_operand.hbm [shape: bf16[128,128], index: 2, kind: input, shape index: {}]
  %s3 = inlined_call_operand.hbm [shape: bf16[128,128], index: 3, kind: input, shape index: {}]
  %s4 = inlined_call_operand.vmem [shape: f32[1,128], index: 4, kind: input, shape index: {}]
  %s5 = inlined_call_operand.hbm [shape: bf16[256,128], index: 5, kind: output, shape index: {}]
  %s6 = sld [smem:[#allocation0]]
  $region46: #{tpu_custom_call.1} parent=0
    _
  %s8 = ssub.s32 1, %s6
  %s9 = scalar_select 0, %s8, %s6
  $region1: #{tpu_custom_call.1} parent=0
    #allocation2 [shape = 'u8[131072]{0}', space=vmem, size = 0x20000, scoped, tag = 'input window, operand 0, single buffered']
    #allocation3 [shape = 's32[1]{0}', space=sflag, size = 0x4, scoped, tag = 'scoped memory for tpu_custom_call.1']
    #allocation4 [shape = 's32[1]{0}', space=sflag, size = 0x4, scoped, tag = 'scoped memory for tpu_custom_call.1']
    #allocation5 [shape = 'u8[65536]{0}', space=vmem, size = 0x10000, scoped, tag = 'input window, operand 1, single buffered']
    #allocation6 [shape = 's32[1]{0}', space=sflag, size = 0x4, scoped, tag = 'scoped memory for tpu_custom_call.1']
    #allocation7 [shape = 'u8[32768]{0}', space=vmem, size = 0x8000, scoped, tag = 'input window, operand 2, single buffered']
    #allocation8 [shape = 'u8[32768]{0}', space=vmem, size = 0x8000, scoped, tag = 'input window, operand 3, single buffered']
    #allocation9 [shape = 's32[1]{0}', space=sflag, size = 0x4, scoped, tag = 'scoped memory for tpu_custom_call.1']
    #allocation10 [shape = 'u8[65536]{0}', space=vmem, size = 0x10000, scoped, tag = 'output window, operand 0, single buffered']
    %10 = vsyncpa [#allocation3], 0
    %11 = vsyncpa [#allocation6], 0
    %12 = vsyncpa [#allocation9], 0
    %13 = vsyncpa [#allocation4], 0
    // Predicated region
    $region2: #{tpu_custom_call.1} parent=1 // pred_check
      _
    $region3: #{tpu_custom_call.1} parent=1 // pred_check_branch
      %15 = sbr.rel (0) target = $region5
    $region4: #{tpu_custom_call.1} parent=1 // pred_region
      %17 = vsyncadd [#allocation3], 0
      %s18 = sshll.u32 %s0, 4
      %s19 = int_to_ptr.hbm [resolvable:$true] %s18
      %s20 = sshll.u32 [#allocation2], 4
      %s21 = int_to_ptr.vmem [resolvable:$true] %s20
      %26 = dma.hbm_to_vmem [thread:$0]  %s19, 4096, %s21, [#allocation3], 128, 128, 8
    $region5: #{tpu_custom_call.1} parent=1 // pred_fallthru
      _
    // Predicated region
    $region6: #{tpu_custom_call.1} parent=1 // pred_check
      _
    $region7: #{tpu_custom_call.1} parent=1 // pred_check_branch
      %28 = sbr.rel (0) target = $region9
    $region8: #{tpu_custom_call.1} parent=1 // pred_region
      %30 = vsyncadd [#allocation6], 0
      %s31 = sshll.u32 %s1, 4
      %s32 = int_to_ptr.hbm [resolvable:$true] %s31
      %s33 = sshll.u32 [#allocation5], 4
      %s34 = int_to_ptr.vmem [resolvable:$true] %s33
      %39 = dma.hbm_to_vmem [thread:$0]  %s32, 2048, %s34, [#allocation6], 64, 64, 4
    $region9: #{tpu_custom_call.1} parent=1 // pred_fallthru
      _
    // Predicated region
    $region10: #{tpu_custom_call.1} parent=1 // pred_check
      _
    $region11: #{tpu_custom_call.1} parent=1 // pred_check_branch
      %41 = sbr.rel (0) target = $region13
    $region12: #{tpu_custom_call.1} parent=1 // pred_region
      %43 = vsyncadd [#allocation6], 0
      %s44 = sshll.u32 %s2, 4
      %s45 = int_to_ptr.hbm [resolvable:$true] %s44
      %s46 = sshll.u32 [#allocation7], 4
      %s47 = int_to_ptr.vmem [resolvable:$true] %s46
      %52 = dma.hbm_to_vmem [thread:$0]  %s45, 1024, %s47, [#allocation6], 64, 64, 4
    $region13: #{tpu_custom_call.1} parent=1 // pred_fallthru
      _
    // Predicated region
    $region14: #{tpu_custom_call.1} parent=1 // pred_check
      _
    $region15: #{tpu_custom_call.1} parent=1 // pred_check_branch
      %54 = sbr.rel (0) target = $region17
    $region16: #{tpu_custom_call.1} parent=1 // pred_region
      %56 = vsyncadd [#allocation9], 0
      %s57 = sshll.u32 %s3, 4
      %s58 = int_to_ptr.hbm [resolvable:$true] %s57
      %s59 = sshll.u32 [#allocation8], 4
      %s60 = int_to_ptr.vmem [resolvable:$true] %s59
      %65 = dma.hbm_to_vmem [thread:$0]  %s58, 1024, %s60, [#allocation9], 64, 64, 4
    $region17: #{tpu_custom_call.1} parent=1 // pred_fallthru
      _
    // Predicated region
    $region18: #{tpu_custom_call.1} parent=1 // pred_check
      _
    $region19: #{tpu_custom_call.1} parent=1 // pred_check_branch
      %67 = sbr.rel (0) target = $region21
    $region20: #{tpu_custom_call.1} parent=1 // pred_region
      _
    $region21: #{tpu_custom_call.1} parent=1 // pred_fallthru
      _
    // Predicated region
    $region22: #{tpu_custom_call.1} parent=1 // pred_check
      _
    $region23: #{tpu_custom_call.1} parent=1 // pred_check_branch
      %69 = sbr.rel (0) target = $region25
    $region24: #{tpu_custom_call.1} parent=1 // pred_region
      %71 = dma.done [#allocation3], 4096
    $region25: #{tpu_custom_call.1} parent=1 // pred_fallthru
      _
    // Predicated region
    $region26: #{tpu_custom_call.1} parent=1 // pred_check
      _
    $region27: #{tpu_custom_call.1} parent=1 // pred_check_branch
      %73 = sbr.rel (0) target = $region29
    $region28: #{tpu_custom_call.1} parent=1 // pred_region
      %75 = dma.done [#allocation6], 2048
    $region29: #{tpu_custom_call.1} parent=1 // pred_fallthru
      _
    // Predicated region
    $region30: #{tpu_custom_call.1} parent=1 // pred_check
      _
    $region31: #{tpu_custom_call.1} parent=1 // pred_check_branch
      %77 = sbr.rel (0) target = $region33
    $region32: #{tpu_custom_call.1} parent=1 // pred_region
      %79 = dma.done [#allocation6], 1024
    $region33: #{tpu_custom_call.1} parent=1 // pred_fallthru
      _
    // Predicated region
    $region34: #{tpu_custom_call.1} parent=1 // pred_check
      _
    $region35: #{tpu_custom_call.1} parent=1 // pred_check_branch
      %81 = sbr.rel (0) target = $region37
    $region36: #{tpu_custom_call.1} parent=1 // pred_region
      %83 = dma.done [#allocation9], 1024
    $region37: #{tpu_custom_call.1} parent=1 // pred_fallthru
      _
    %v84 = vld [vmem:[#allocation5] sm:$0xf]
    %v85 = vld [vmem:[#allocation5 + $0x4] sm:$0xf]
    %v86 = vld [vmem:[#allocation5 + $0x8] sm:$0xf]
    %v87 = vld [vmem:[#allocation5 + $0xc] sm:$0xf]
    %v88 = vld [vmem:[#allocation5 + $0x10] sm:$0xf]
    %v89 = vld [vmem:[#allocation5 + $0x14] sm:$0xf]
    %v90 = vld [vmem:[#allocation5 + $0x18] sm:$0xf]
    %v91 = vld [vmem:[#allocation5 + $0x1c] sm:$0xf]
    %v92 = vld [vmem:[#allocation5 + $0x20] sm:$0xf]
    %v93 = vld [vmem:[#allocation5 + $0x24] sm:$0xf]
    %v94 = vld [vmem:[#allocation5 + $0x28] sm:$0xf]
    %v95 = vld [vmem:[#allocation5 + $0x2c] sm:$0xf]
    %v96 = vld [vmem:[#allocation5 + $0x30] sm:$0xf]
    %v97 = vld [vmem:[#allocation5 + $0x34] sm:$0xf]
    %v98 = vld [vmem:[#allocation5 + $0x38] sm:$0xf]
    %v99 = vld [vmem:[#allocation5 + $0x3c] sm:$0xf]
    %v100 = vld [vmem:[#allocation5 + $0x40] sm:$0xf]
    %v101 = vld [vmem:[#allocation5 + $0x44] sm:$0xf]
    %v102 = vld [vmem:[#allocation5 + $0x48] sm:$0xf]
    %v103 = vld [vmem:[#allocation5 + $0x4c] sm:$0xf]
    %v104 = vld [vmem:[#allocation5 + $0x50] sm:$0xf]
    %v105 = vld [vmem:[#allocation5 + $0x54] sm:$0xf]
    %v106 = vld [vmem:[#allocation5 + $0x58] sm:$0xf]
    %v107 = vld [vmem:[#allocation5 + $0x5c] sm:$0xf]
    %v108 = vld [vmem:[#allocation5 + $0x60] sm:$0xf]
    %v109 = vld [vmem:[#allocation5 + $0x64] sm:$0xf]
    %v110 = vld [vmem:[#allocation5 + $0x68] sm:$0xf]
    %v111 = vld [vmem:[#allocation5 + $0x6c] sm:$0xf]
    %v112 = vld [vmem:[#allocation5 + $0x70] sm:$0xf]
    %v113 = vld [vmem:[#allocation5 + $0x74] sm:$0xf]
    %v114 = vld [vmem:[#allocation5 + $0x78] sm:$0xf]
    %v115 = vld [vmem:[#allocation5 + $0x7c] sm:$0xf]
    %v116 = vld [vmem:[#allocation2] sm:$0xff]
    %v117 = vld [vmem:[#allocation2 + $0x8] sm:$0xff]
    %v118 = vld [vmem:[#allocation2 + $0x10] sm:$0xff]
    %v119 = vld [vmem:[#allocation2 + $0x18] sm:$0xff]
    %v120 = vld [vmem:[#allocation2 + $0x20] sm:$0xff]
    %v121 = vld [vmem:[#allocation2 + $0x28] sm:$0xff]
    %v122 = vld [vmem:[#allocation2 + $0x30] sm:$0xff]
    %v123 = vld [vmem:[#allocation2 + $0x38] sm:$0xff]
    %v124 = vld [vmem:[#allocation2 + $0x40] sm:$0xff]
    %v125 = vld [vmem:[#allocation2 + $0x48] sm:$0xff]
    %v126 = vld [vmem:[#allocation2 + $0x50] sm:$0xff]
    %v127 = vld [vmem:[#allocation2 + $0x58] sm:$0xff]
    %v128 = vld [vmem:[#allocation2 + $0x60] sm:$0xff]
    %v129 = vld [vmem:[#allocation2 + $0x68] sm:$0xff]
    %v130 = vld [vmem:[#allocation2 + $0x70] sm:$0xff]
    %v131 = vld [vmem:[#allocation2 + $0x78] sm:$0xff]
    %v132 = vld [vmem:[#allocation2 + $0x80] sm:$0xff]
    %v133 = vld [vmem:[#allocation2 + $0x88] sm:$0xff]
    %v134 = vld [vmem:[#allocation2 + $0x90] sm:$0xff]
    %v135 = vld [vmem:[#allocation2 + $0x98] sm:$0xff]
    %v136 = vld [vmem:[#allocation2 + $0xa0] sm:$0xff]
    %v137 = vld [vmem:[#allocation2 + $0xa8] sm:$0xff]
    %v138 = vld [vmem:[#allocation2 + $0xb0] sm:$0xff]
    %v139 = vld [vmem:[#allocation2 + $0xb8] sm:$0xff]
    %v140 = vld [vmem:[#allocation2 + $0xc0] sm:$0xff]
    %v141 = vld [vmem:[#allocation2 + $0xc8] sm:$0xff]
    %v142 = vld [vmem:[#allocation2 + $0xd0] sm:$0xff]
    %v143 = vld [vmem:[#allocation2 + $0xd8] sm:$0xff]
    %v144 = vld [vmem:[#allocation2 + $0xe0] sm:$0xff]
    %v145 = vld [vmem:[#allocation2 + $0xe8] sm:$0xff]
    %v146 = vld [vmem:[#allocation2 + $0xf0] sm:$0xff]
    %v147 = vld [vmem:[#allocation2 + $0xf8] sm:$0xff]
    %v180 = vunpack.c.l.b16 %v116
    %v181 = vunpack.c.h.b16 %v116
    %v182 = vunpack.c.l.b16 %v117
    %v183 = vunpack.c.h.b16 %v117
    %v184 = vunpack.c.l.b16 %v118
    %v185 = vunpack.c.h.b16 %v118
    %v186 = vunpack.c.l.b16 %v119
    %v187 = vunpack.c.h.b16 %v119
    %v188 = vunpack.c.l.b16 %v120
    %v189 = vunpack.c.h.b16 %v120
    %v190 = vunpack.c.l.b16 %v121
    %v191 = vunpack.c.h.b16 %v121
    %v192 = vunpack.c.l.b16 %v122
    %v193 = vunpack.c.h.b16 %v122
    %v194 = vunpack.c.l.b16 %v123
    %v195 = vunpack.c.h.b16 %v123
    %v196 = vunpack.c.l.b16 %v124
    %v197 = vunpack.c.h.b16 %v124
    %v198 = vunpack.c.l.b16 %v125
    %v199 = vunpack.c.h.b16 %v125
    %v200 = vunpack.c.l.b16 %v126
    %v201 = vunpack.c.h.b16 %v126
    %v202 = vunpack.c.l.b16 %v127
    %v203 = vunpack.c.h.b16 %v127
    %v204 = vunpack.c.l.b16 %v128
    %v205 = vunpack.c.h.b16 %v128
    %v206 = vunpack.c.l.b16 %v129
    %v207 = vunpack.c.h.b16 %v129
    %v208 = vunpack.c.l.b16 %v130
    %v209 = vunpack.c.h.b16 %v130
    %v210 = vunpack.c.l.b16 %v131
    %v211 = vunpack.c.h.b16 %v131
    %v212 = vunpack.c.l.b16 %v132
    %v213 = vunpack.c.h.b16 %v132
    %v214 = vunpack.c.l.b16 %v133
    %v215 = vunpack.c.h.b16 %v133
    %v216 = vunpack.c.l.b16 %v134
    %v217 = vunpack.c.h.b16 %v134
    %v218 = vunpack.c.l.b16 %v135
    %v219 = vunpack.c.h.b16 %v135
    %v220 = vunpack.c.l.b16 %v136
    %v221 = vunpack.c.h.b16 %v136
    %v222 = vunpack.c.l.b16 %v137
    %v223 = vunpack.c.h.b16 %v137
    %v224 = vunpack.c.l.b16 %v138
    %v225 = vunpack.c.h.b16 %v138
    %v226 = vunpack.c.l.b16 %v139
    %v227 = vunpack.c.h.b16 %v139
    %v228 = vunpack.c.l.b16 %v140
    %v229 = vunpack.c.h.b16 %v140
    %v230 = vunpack.c.l.b16 %v141
    %v231 = vunpack.c.h.b16 %v141
    %v232 = vunpack.c.l.b16 %v142
    %v233 = vunpack.c.h.b16 %v142
    %v234 = vunpack.c.l.b16 %v143
    %v235 = vunpack.c.h.b16 %v143
    %v236 = vunpack.c.l.b16 %v144
    %v237 = vunpack.c.h.b16 %v144
    %v238 = vunpack.c.l.b16 %v145
    %v239 = vunpack.c.h.b16 %v145
    %v240 = vunpack.c.l.b16 %v146
    %v241 = vunpack.c.h.b16 %v146
    %v242 = vunpack.c.l.b16 %v147
    %v243 = vunpack.c.h.b16 %v147
    %v244 = vpack.c.b16 %v182, %v180
    %v245 = vpack.c.b16 %v183, %v181
    %v246 = vpack.c.b16 %v186, %v184
    %v247 = vpack.c.b16 %v187, %v185
    %v248 = vpack.c.b16 %v190, %v188
    %v249 = vpack.c.b16 %v191, %v189
    %v250 = vpack.c.b16 %v194, %v192
    %v251 = vpack.c.b16 %v195, %v193
    %v252 = vpack.c.b16 %v198, %v196
    %v253 = vpack.c.b16 %v199, %v197
    %v254 = vpack.c.b16 %v202, %v200
    %v255 = vpack.c.b16 %v203, %v201
    %v256 = vpack.c.b16 %v206, %v204
    %v257 = vpack.c.b16 %v207, %v205
    %v258 = vpack.c.b16 %v210, %v208
    %v259 = vpack.c.b16 %v211, %v209
    %v260 = vpack.c.b16 %v214, %v212
    %v261 = vpack.c.b16 %v215, %v213
    %v262 = vpack.c.b16 %v218, %v216
    %v263 = vpack.c.b16 %v219, %v217
    %v264 = vpack.c.b16 %v222, %v220
    %v265 = vpack.c.b16 %v223, %v221
    %v266 = vpack.c.b16 %v226, %v224
    %v267 = vpack.c.b16 %v227, %v225
    %v268 = vpack.c.b16 %v230, %v228
    %v269 = vpack.c.b16 %v231, %v229
    %v270 = vpack.c.b16 %v234, %v232
    %v271 = vpack.c.b16 %v235, %v233
    %v272 = vpack.c.b16 %v238, %v236
    %v273 = vpack.c.b16 %v239, %v237
    %v274 = vpack.c.b16 %v242, %v240
    %v275 = vpack.c.b16 %v243, %v241
    %v340 = vunpack.c.l.b16 %v84
    %v341 = vunpack.c.l.b16 %v85
    %v342 = vunpack.c.l.b16 %v86
    %v343 = vunpack.c.l.b16 %v87
    %v344 = vunpack.c.l.b16 %v88
    %v345 = vunpack.c.l.b16 %v89
    %v346 = vunpack.c.l.b16 %v90
    %v347 = vunpack.c.l.b16 %v91
    %v348 = vunpack.c.l.b16 %v92
    %v349 = vunpack.c.l.b16 %v93
    %v350 = vunpack.c.l.b16 %v94
    %v351 = vunpack.c.l.b16 %v95
    %v352 = vunpack.c.l.b16 %v96
    %v353 = vunpack.c.l.b16 %v97
    %v354 = vunpack.c.l.b16 %v98
    %v355 = vunpack.c.l.b16 %v99
    %v356 = vunpack.c.l.b16 %v100
    %v357 = vunpack.c.l.b16 %v101
    %v358 = vunpack.c.l.b16 %v102
    %v359 = vunpack.c.l.b16 %v103
    %v360 = vunpack.c.l.b16 %v104
    %v361 = vunpack.c.l.b16 %v105
    %v362 = vunpack.c.l.b16 %v106
    %v363 = vunpack.c.l.b16 %v107
    %v364 = vunpack.c.l.b16 %v108
    %v365 = vunpack.c.l.b16 %v109
    %v366 = vunpack.c.l.b16 %v110
    %v367 = vunpack.c.l.b16 %v111
    %v368 = vunpack.c.l.b16 %v112
    %v369 = vunpack.c.l.b16 %v113
    %v370 = vunpack.c.l.b16 %v114
    %v371 = vunpack.c.l.b16 %v115
    %v372 = vpack.c.b16 %v341, %v340
    %v373 = vpack.c.b16 %v343, %v342
    %v374 = vpack.c.b16 %v345, %v344
    %v375 = vpack.c.b16 %v347, %v346
    %v376 = vpack.c.b16 %v349, %v348
    %v377 = vpack.c.b16 %v351, %v350
    %v378 = vpack.c.b16 %v353, %v352
    %v379 = vpack.c.b16 %v355, %v354
    %v380 = vpack.c.b16 %v357, %v356
    %v381 = vpack.c.b16 %v359, %v358
    %v382 = vpack.c.b16 %v361, %v360
    %v383 = vpack.c.b16 %v363, %v362
    %v384 = vpack.c.b16 %v365, %v364
    %v385 = vpack.c.b16 %v367, %v366
    %v386 = vpack.c.b16 %v369, %v368
    %v387 = vpack.c.b16 %v371, %v370
    %404 = vmatpush.bf16.msra.mxu0 %v379
    %405 = vmatpush.bf16.msra.mxu0 %v378
    %406 = vmatpush.bf16.msra.mxu0 %v377
    %407 = vmatpush.bf16.msra.mxu0 %v376
    %408 = vmatpush.bf16.msra.mxu0 %v375
    %409 = vmatpush.bf16.msra.mxu0 %v374
    %410 = vmatpush.bf16.msra.mxu0 %v373
    %411 = vmatpush.bf16.msra.mxu0 %v372
    %412 = vmatmul.bf16.gmra.mxu0 %v244
    %v413 = vpop.f32.mrf.mxu0
    %v414 = vadd.f32 0.0, %v413
    %v415 = vpop.f32.mrf.mxu0
    %v416 = vadd.f32 0.0, %v415
    %417 = vmatmul.bf16.gmra.mxu0 %v246
    %v418 = vpop.f32.mrf.mxu0
    %v419 = vadd.f32 0.0, %v418
    %v420 = vpop.f32.mrf.mxu0
    %v421 = vadd.f32 0.0, %v420
    %422 = vmatmul.bf16.gmra.mxu0 %v248
    %v423 = vpop.f32.mrf.mxu0
    %v424 = vadd.f32 0.0, %v423
    %v425 = vpop.f32.mrf.mxu0
    %v426 = vadd.f32 0.0, %v425
    %427 = vmatmul.bf16.gmra.mxu0 %v250
    %v428 = vpop.f32.mrf.mxu0
    %v429 = vadd.f32 0.0, %v428
    %v430 = vpop.f32.mrf.mxu0
    %v431 = vadd.f32 0.0, %v430
    %432 = vmatmul.bf16.gmra.mxu0 %v252
    %v433 = vpop.f32.mrf.mxu0
    %v434 = vadd.f32 0.0, %v433
    %v435 = vpop.f32.mrf.mxu0
    %v436 = vadd.f32 0.0, %v435
    %437 = vmatmul.bf16.gmra.mxu0 %v254
    %v438 = vpop.f32.mrf.mxu0
    %v439 = vadd.f32 0.0, %v438
    %v440 = vpop.f32.mrf.mxu0
    %v441 = vadd.f32 0.0, %v440
    %442 = vmatmul.bf16.gmra.mxu0 %v256
    %v443 = vpop.f32.mrf.mxu0
    %v444 = vadd.f32 0.0, %v443
    %v445 = vpop.f32.mrf.mxu0
    %v446 = vadd.f32 0.0, %v445
    %447 = vmatmul.bf16.gmra.mxu0 %v258
    %v448 = vpop.f32.mrf.mxu0
    %v449 = vadd.f32 0.0, %v448
    %v450 = vpop.f32.mrf.mxu0
    %v451 = vadd.f32 0.0, %v450
    %452 = vmatmul.bf16.gmra.mxu0 %v260
    %v453 = vpop.f32.mrf.mxu0
    %v454 = vadd.f32 0.0, %v453
    %v455 = vpop.f32.mrf.mxu0
    %v456 = vadd.f32 0.0, %v455
    %457 = vmatmul.bf16.gmra.mxu0 %v262
    %v458 = vpop.f32.mrf.mxu0
    %v459 = vadd.f32 0.0, %v458
    %v460 = vpop.f32.mrf.mxu0
    %v461 = vadd.f32 0.0, %v460
    %462 = vmatmul.bf16.gmra.mxu0 %v264
    %v463 = vpop.f32.mrf.mxu0
    %v464 = vadd.f32 0.0, %v463
    %v465 = vpop.f32.mrf.mxu0
    %v466 = vadd.f32 0.0, %v465
    %467 = vmatmul.bf16.gmra.mxu0 %v266
    %v468 = vpop.f32.mrf.mxu0
    %v469 = vadd.f32 0.0, %v468
    %v470 = vpop.f32.mrf.mxu0
    %v471 = vadd.f32 0.0, %v470
    %472 = vmatmul.bf16.gmra.mxu0 %v268
    %v473 = vpop.f32.mrf.mxu0
    %v474 = vadd.f32 0.0, %v473
    %v475 = vpop.f32.mrf.mxu0
    %v476 = vadd.f32 0.0, %v475
    %477 = vmatmul.bf16.gmra.mxu0 %v270
    %v478 = vpop.f32.mrf.mxu0
    %v479 = vadd.f32 0.0, %v478
    %v480 = vpop.f32.mrf.mxu0
    %v481 = vadd.f32 0.0, %v480
    %482 = vmatmul.bf16.gmra.mxu0 %v272
    %v483 = vpop.f32.mrf.mxu0
    %v484 = vadd.f32 0.0, %v483
    %v485 = vpop.f32.mrf.mxu0
    %v486 = vadd.f32 0.0, %v485
    %487 = vmatmul.bf16.gmra.mxu0 %v274
    %v488 = vpop.f32.mrf.mxu0
    %v489 = vadd.f32 0.0, %v488
    %v490 = vpop.f32.mrf.mxu0
    %v491 = vadd.f32 0.0, %v490
    %492 = vdwg.mxu0
    %493 = vmatpush.bf16.msra.mxu0 %v387
    %494 = vmatpush.bf16.msra.mxu0 %v386
    %495 = vmatpush.bf16.msra.mxu0 %v385
    %496 = vmatpush.bf16.msra.mxu0 %v384
    %497 = vmatpush.bf16.msra.mxu0 %v383
    %498 = vmatpush.bf16.msra.mxu0 %v382
    %499 = vmatpush.bf16.msra.mxu0 %v381
    %500 = vmatpush.bf16.msra.mxu0 %v380
    %501 = vmatmul.bf16.gmra.mxu0 %v245
    %v502 = vpop.f32.mrf.mxu0
    %v503 = vadd.f32 %v414, %v502
    %v504 = vpop.f32.mrf.mxu0
    %v505 = vadd.f32 %v416, %v504
    %506 = vmatmul.bf16.gmra.mxu0 %v247
    %v507 = vpop.f32.mrf.mxu0
    %v508 = vadd.f32 %v419, %v507
    %v509 = vpop.f32.mrf.mxu0
    %v510 = vadd.f32 %v421, %v509
    %511 = vmatmul.bf16.gmra.mxu0 %v249
    %v512 = vpop.f32.mrf.mxu0
    %v513 = vadd.f32 %v424, %v512
    %v514 = vpop.f32.mrf.mxu0
    %v515 = vadd.f32 %v426, %v514
    %516 = vmatmul.bf16.gmra.mxu0 %v251
    %v517 = vpop.f32.mrf.mxu0
    %v518 = vadd.f32 %v429, %v517
    %v519 = vpop.f32.mrf.mxu0
    %v520 = vadd.f32 %v431, %v519
    %521 = vmatmul.bf16.gmra.mxu0 %v253
    %v522 = vpop.f32.mrf.mxu0
    %v523 = vadd.f32 %v434, %v522
    %v524 = vpop.f32.mrf.mxu0
    %v525 = vadd.f32 %v436, %v524
    %526 = vmatmul.bf16.gmra.mxu0 %v255
    %v527 = vpop.f32.mrf.mxu0
    %v528 = vadd.f32 %v439, %v527
    %v529 = vpop.f32.mrf.mxu0
    %v530 = vadd.f32 %v441, %v529
    %531 = vmatmul.bf16.gmra.mxu0 %v257
    %v532 = vpop.f32.mrf.mxu0
    %v533 = vadd.f32 %v444, %v532
    %v534 = vpop.f32.mrf.mxu0
    %v535 = vadd.f32 %v446, %v534
    %536 = vmatmul.bf16.gmra.mxu0 %v259
    %v537 = vpop.f32.mrf.mxu0
    %v538 = vadd.f32 %v449, %v537
    %v539 = vpop.f32.mrf.mxu0
    %v540 = vadd.f32 %v451, %v539
    %541 = vmatmul.bf16.gmra.mxu0 %v261
    %v542 = vpop.f32.mrf.mxu0
    %v543 = vadd.f32 %v454, %v542
    %v544 = vpop.f32.mrf.mxu0
    %v545 = vadd.f32 %v456, %v544
    %546 = vmatmul.bf16.gmra.mxu0 %v263
    %v547 = vpop.f32.mrf.mxu0
    %v548 = vadd.f32 %v459, %v547
    %v549 = vpop.f32.mrf.mxu0
    %v550 = vadd.f32 %v461, %v549
    %551 = vmatmul.bf16.gmra.mxu0 %v265
    %v552 = vpop.f32.mrf.mxu0
    %v553 = vadd.f32 %v464, %v552
    %v554 = vpop.f32.mrf.mxu0
    %v555 = vadd.f32 %v466, %v554
    %556 = vmatmul.bf16.gmra.mxu0 %v267
    %v557 = vpop.f32.mrf.mxu0
    %v558 = vadd.f32 %v469, %v557
    %v559 = vpop.f32.mrf.mxu0
    %v560 = vadd.f32 %v471, %v559
    %561 = vmatmul.bf16.gmra.mxu0 %v269
    %v562 = vpop.f32.mrf.mxu0
    %v563 = vadd.f32 %v474, %v562
    %v564 = vpop.f32.mrf.mxu0
    %v565 = vadd.f32 %v476, %v564
    %566 = vmatmul.bf16.gmra.mxu0 %v271
    %v567 = vpop.f32.mrf.mxu0
    %v568 = vadd.f32 %v479, %v567
    %v569 = vpop.f32.mrf.mxu0
    %v570 = vadd.f32 %v481, %v569
    %571 = vmatmul.bf16.gmra.mxu0 %v273
    %v572 = vpop.f32.mrf.mxu0
    %v573 = vadd.f32 %v484, %v572
    %v574 = vpop.f32.mrf.mxu0
    %v575 = vadd.f32 %v486, %v574
    %576 = vmatmul.bf16.gmra.mxu0 %v275
    %v577 = vpop.f32.mrf.mxu0
    %v578 = vadd.f32 %v489, %v577
    %v579 = vpop.f32.mrf.mxu0
    %v580 = vadd.f32 %v491, %v579
    %581 = vdwg.mxu0
    %v582 = vld [vmem:[#allocation7] sm:$0xf]
    %v583 = vld [vmem:[#allocation7 + $0x4] sm:$0xf]
    %v584 = vld [vmem:[#allocation7 + $0x8] sm:$0xf]
    %v585 = vld [vmem:[#allocation7 + $0xc] sm:$0xf]
    %v586 = vld [vmem:[#allocation7 + $0x10] sm:$0xf]
    %v587 = vld [vmem:[#allocation7 + $0x14] sm:$0xf]
    %v588 = vld [vmem:[#allocation7 + $0x18] sm:$0xf]
    %v589 = vld [vmem:[#allocation7 + $0x1c] sm:$0xf]
    %v590 = vld [vmem:[#allocation7 + $0x20] sm:$0xf]
    %v591 = vld [vmem:[#allocation7 + $0x24] sm:$0xf]
    %v592 = vld [vmem:[#allocation7 + $0x28] sm:$0xf]
    %v593 = vld [vmem:[#allocation7 + $0x2c] sm:$0xf]
    %v594 = vld [vmem:[#allocation7 + $0x30] sm:$0xf]
    %v595 = vld [vmem:[#allocation7 + $0x34] sm:$0xf]
    %v596 = vld [vmem:[#allocation7 + $0x38] sm:$0xf]
    %v597 = vld [vmem:[#allocation7 + $0x3c] sm:$0xf]
    %v598 = vpack.c.bf16 %v505, %v503
    %v599 = vpack.c.bf16 %v510, %v508
    %v600 = vpack.c.bf16 %v515, %v513
    %v601 = vpack.c.bf16 %v520, %v518
    %v602 = vpack.c.bf16 %v525, %v523
    %v603 = vpack.c.bf16 %v530, %v528
    %v604 = vpack.c.bf16 %v535, %v533
    %v605 = vpack.c.bf16 %v540, %v538
    %v606 = vpack.c.bf16 %v545, %v543
    %v607 = vpack.c.bf16 %v550, %v548
    %v608 = vpack.c.bf16 %v555, %v553
    %v609 = vpack.c.bf16 %v560, %v558
    %v610 = vpack.c.bf16 %v565, %v563
    %v611 = vpack.c.bf16 %v570, %v568
    %v612 = vpack.c.bf16 %v575, %v573
    %v613 = vpack.c.bf16 %v580, %v578
    %v614 = vld [vmem:[#allocation8] sm:$0xf]
    %v615 = vld [vmem:[#allocation8 + $0x4] sm:$0xf]
    %v616 = vld [vmem:[#allocation8 + $0x8] sm:$0xf]
    %v617 = vld [vmem:[#allocation8 + $0xc] sm:$0xf]
    %v618 = vld [vmem:[#allocation8 + $0x10] sm:$0xf]
    %v619 = vld [vmem:[#allocation8 + $0x14] sm:$0xf]
    %v620 = vld [vmem:[#allocation8 + $0x18] sm:$0xf]
    %v621 = vld [vmem:[#allocation8 + $0x1c] sm:$0xf]
    %v622 = vld [vmem:[#allocation8 + $0x20] sm:$0xf]
    %v623 = vld [vmem:[#allocation8 + $0x24] sm:$0xf]
    %v624 = vld [vmem:[#allocation8 + $0x28] sm:$0xf]
    %v625 = vld [vmem:[#allocation8 + $0x2c] sm:$0xf]
    %v626 = vld [vmem:[#allocation8 + $0x30] sm:$0xf]
    %v627 = vld [vmem:[#allocation8 + $0x34] sm:$0xf]
    %v628 = vld [vmem:[#allocation8 + $0x38] sm:$0xf]
    %v629 = vld [vmem:[#allocation8 + $0x3c] sm:$0xf]
    %v646 = vunpack.c.l.b16 %v614
    %v647 = vunpack.c.l.b16 %v615
    %v648 = vunpack.c.l.b16 %v616
    %v649 = vunpack.c.l.b16 %v617
    %v650 = vunpack.c.l.b16 %v618
    %v651 = vunpack.c.l.b16 %v619
    %v652 = vunpack.c.l.b16 %v620
    %v653 = vunpack.c.l.b16 %v621
    %v654 = vunpack.c.l.b16 %v622
    %v655 = vunpack.c.l.b16 %v623
    %v656 = vunpack.c.l.b16 %v624
    %v657 = vunpack.c.l.b16 %v625
    %v658 = vunpack.c.l.b16 %v626
    %v659 = vunpack.c.l.b16 %v627
    %v660 = vunpack.c.l.b16 %v628
    %v661 = vunpack.c.l.b16 %v629
    %v662 = vpack.c.b16 %v647, %v646
    %v663 = vpack.c.b16 %v649, %v648
    %v664 = vpack.c.b16 %v651, %v650
    %v665 = vpack.c.b16 %v653, %v652
    %v666 = vpack.c.b16 %v655, %v654
    %v667 = vpack.c.b16 %v657, %v656
    %v668 = vpack.c.b16 %v659, %v658
    %v669 = vpack.c.b16 %v661, %v660
    %678 = vmatpush.bf16.msra.mxu0 %v669
    %679 = vmatpush.bf16.msra.mxu0 %v668
    %680 = vmatpush.bf16.msra.mxu0 %v667
    %681 = vmatpush.bf16.msra.mxu0 %v666
    %682 = vmatpush.bf16.msra.mxu0 %v665
    %683 = vmatpush.bf16.msra.mxu0 %v664
    %684 = vmatpush.bf16.msra.mxu0 %v663
    %685 = vmatpush.bf16.msra.mxu0 %v662
    %686 = vmatmul.bf16.gmra.mxu0 %v598
    %v687 = vpop.f32.mrf.mxu0
    %v688 = vadd.f32 0.0, %v687
    %v689 = vpop.f32.mrf.mxu0
    %v690 = vadd.f32 0.0, %v689
    %691 = vmatmul.bf16.gmra.mxu0 %v599
    %v692 = vpop.f32.mrf.mxu0
    %v693 = vadd.f32 0.0, %v692
    %v694 = vpop.f32.mrf.mxu0
    %v695 = vadd.f32 0.0, %v694
    %696 = vmatmul.bf16.gmra.mxu0 %v600
    %v697 = vpop.f32.mrf.mxu0
    %v698 = vadd.f32 0.0, %v697
    %v699 = vpop.f32.mrf.mxu0
    %v700 = vadd.f32 0.0, %v699
    %701 = vmatmul.bf16.gmra.mxu0 %v601
    %v702 = vpop.f32.mrf.mxu0
    %v703 = vadd.f32 0.0, %v702
    %v704 = vpop.f32.mrf.mxu0
    %v705 = vadd.f32 0.0, %v704
    %706 = vmatmul.bf16.gmra.mxu0 %v602
    %v707 = vpop.f32.mrf.mxu0
    %v708 = vadd.f32 0.0, %v707
    %v709 = vpop.f32.mrf.mxu0
    %v710 = vadd.f32 0.0, %v709
    %711 = vmatmul.bf16.gmra.mxu0 %v603
    %v712 = vpop.f32.mrf.mxu0
    %v713 = vadd.f32 0.0, %v712
    %v714 = vpop.f32.mrf.mxu0
    %v715 = vadd.f32 0.0, %v714
    %716 = vmatmul.bf16.gmra.mxu0 %v604
    %v717 = vpop.f32.mrf.mxu0
    %v718 = vadd.f32 0.0, %v717
    %v719 = vpop.f32.mrf.mxu0
    %v720 = vadd.f32 0.0, %v719
    %721 = vmatmul.bf16.gmra.mxu0 %v605
    %v722 = vpop.f32.mrf.mxu0
    %v723 = vadd.f32 0.0, %v722
    %v724 = vpop.f32.mrf.mxu0
    %v725 = vadd.f32 0.0, %v724
    %726 = vmatmul.bf16.gmra.mxu0 %v606
    %v727 = vpop.f32.mrf.mxu0
    %v728 = vadd.f32 0.0, %v727
    %v729 = vpop.f32.mrf.mxu0
    %v730 = vadd.f32 0.0, %v729
    %731 = vmatmul.bf16.gmra.mxu0 %v607
    %v732 = vpop.f32.mrf.mxu0
    %v733 = vadd.f32 0.0, %v732
    %v734 = vpop.f32.mrf.mxu0
    %v735 = vadd.f32 0.0, %v734
    %736 = vmatmul.bf16.gmra.mxu0 %v608
    %v737 = vpop.f32.mrf.mxu0
    %v738 = vadd.f32 0.0, %v737
    %v739 = vpop.f32.mrf.mxu0
    %v740 = vadd.f32 0.0, %v739
    %741 = vmatmul.bf16.gmra.mxu0 %v609
    %v742 = vpop.f32.mrf.mxu0
    %v743 = vadd.f32 0.0, %v742
    %v744 = vpop.f32.mrf.mxu0
    %v745 = vadd.f32 0.0, %v744
    %746 = vmatmul.bf16.gmra.mxu0 %v610
    %v747 = vpop.f32.mrf.mxu0
    %v748 = vadd.f32 0.0, %v747
    %v749 = vpop.f32.mrf.mxu0
    %v750 = vadd.f32 0.0, %v749
    %751 = vmatmul.bf16.gmra.mxu0 %v611
    %v752 = vpop.f32.mrf.mxu0
    %v753 = vadd.f32 0.0, %v752
    %v754 = vpop.f32.mrf.mxu0
    %v755 = vadd.f32 0.0, %v754
    %756 = vmatmul.bf16.gmra.mxu0 %v612
    %v757 = vpop.f32.mrf.mxu0
    %v758 = vadd.f32 0.0, %v757
    %v759 = vpop.f32.mrf.mxu0
    %v760 = vadd.f32 0.0, %v759
    %761 = vmatmul.bf16.gmra.mxu0 %v613
    %v762 = vpop.f32.mrf.mxu0
    %v763 = vadd.f32 0.0, %v762
    %v764 = vpop.f32.mrf.mxu0
    %v765 = vadd.f32 0.0, %v764
    %766 = vdwg.mxu0
    %v783 = vunpack.c.l.b16 %v582
    %v784 = vunpack.c.l.b16 %v583
    %v785 = vunpack.c.l.b16 %v584
    %v786 = vunpack.c.l.b16 %v585
    %v787 = vunpack.c.l.b16 %v586
    %v788 = vunpack.c.l.b16 %v587
    %v789 = vunpack.c.l.b16 %v588
    %v790 = vunpack.c.l.b16 %v589
    %v791 = vunpack.c.l.b16 %v590
    %v792 = vunpack.c.l.b16 %v591
    %v793 = vunpack.c.l.b16 %v592
    %v794 = vunpack.c.l.b16 %v593
    %v795 = vunpack.c.l.b16 %v594
    %v796 = vunpack.c.l.b16 %v595
    %v797 = vunpack.c.l.b16 %v596
    %v798 = vunpack.c.l.b16 %v597
    %v799 = vpack.c.b16 %v784, %v783
    %v800 = vpack.c.b16 %v786, %v785
    %v801 = vpack.c.b16 %v788, %v787
    %v802 = vpack.c.b16 %v790, %v789
    %v803 = vpack.c.b16 %v792, %v791
    %v804 = vpack.c.b16 %v794, %v793
    %v805 = vpack.c.b16 %v796, %v795
    %v806 = vpack.c.b16 %v798, %v797
    %815 = vmatpush.bf16.msra.mxu0 %v806
    %816 = vmatpush.bf16.msra.mxu0 %v805
    %817 = vmatpush.bf16.msra.mxu0 %v804
    %818 = vmatpush.bf16.msra.mxu0 %v803
    %819 = vmatpush.bf16.msra.mxu0 %v802
    %820 = vmatpush.bf16.msra.mxu0 %v801
    %821 = vmatpush.bf16.msra.mxu0 %v800
    %822 = vmatpush.bf16.msra.mxu0 %v799
    %823 = vmatmul.bf16.gmra.mxu0 %v372
    %v824 = vpop.f32.mrf.mxu0
    %v825 = vadd.f32 %v688, %v824
    %v826 = vpop.f32.mrf.mxu0
    %v827 = vadd.f32 %v690, %v826
    %828 = vmatmul.bf16.gmra.mxu0 %v373
    %v829 = vpop.f32.mrf.mxu0
    %v830 = vadd.f32 %v693, %v829
    %v831 = vpop.f32.mrf.mxu0
    %v832 = vadd.f32 %v695, %v831
    %833 = vmatmul.bf16.gmra.mxu0 %v374
    %v834 = vpop.f32.mrf.mxu0
    %v835 = vadd.f32 %v698, %v834
    %v836 = vpop.f32.mrf.mxu0
    %v837 = vadd.f32 %v700, %v836
    %838 = vmatmul.bf16.gmra.mxu0 %v375
    %v839 = vpop.f32.mrf.mxu0
    %v840 = vadd.f32 %v703, %v839
    %v841 = vpop.f32.mrf.mxu0
    %v842 = vadd.f32 %v705, %v841
    %843 = vmatmul.bf16.gmra.mxu0 %v376
    %v844 = vpop.f32.mrf.mxu0
    %v845 = vadd.f32 %v708, %v844
    %v846 = vpop.f32.mrf.mxu0
    %v847 = vadd.f32 %v710, %v846
    %848 = vmatmul.bf16.gmra.mxu0 %v377
    %v849 = vpop.f32.mrf.mxu0
    %v850 = vadd.f32 %v713, %v849
    %v851 = vpop.f32.mrf.mxu0
    %v852 = vadd.f32 %v715, %v851
    %853 = vmatmul.bf16.gmra.mxu0 %v378
    %v854 = vpop.f32.mrf.mxu0
    %v855 = vadd.f32 %v718, %v854
    %v856 = vpop.f32.mrf.mxu0
    %v857 = vadd.f32 %v720, %v856
    %858 = vmatmul.bf16.gmra.mxu0 %v379
    %v859 = vpop.f32.mrf.mxu0
    %v860 = vadd.f32 %v723, %v859
    %v861 = vpop.f32.mrf.mxu0
    %v862 = vadd.f32 %v725, %v861
    %863 = vmatmul.bf16.gmra.mxu0 %v380
    %v864 = vpop.f32.mrf.mxu0
    %v865 = vadd.f32 %v728, %v864
    %v866 = vpop.f32.mrf.mxu0
    %v867 = vadd.f32 %v730, %v866
    %868 = vmatmul.bf16.gmra.mxu0 %v381
    %v869 = vpop.f32.mrf.mxu0
    %v870 = vadd.f32 %v733, %v869
    %v871 = vpop.f32.mrf.mxu0
    %v872 = vadd.f32 %v735, %v871
    %873 = vmatmul.bf16.gmra.mxu0 %v382
    %v874 = vpop.f32.mrf.mxu0
    %v875 = vadd.f32 %v738, %v874
    %v876 = vpop.f32.mrf.mxu0
    %v877 = vadd.f32 %v740, %v876
    %878 = vmatmul.bf16.gmra.mxu0 %v383
    %v879 = vpop.f32.mrf.mxu0
    %v880 = vadd.f32 %v743, %v879
    %v881 = vpop.f32.mrf.mxu0
    %v882 = vadd.f32 %v745, %v881
    %883 = vmatmul.bf16.gmra.mxu0 %v384
    %v884 = vpop.f32.mrf.mxu0
    %v885 = vadd.f32 %v748, %v884
    %v886 = vpop.f32.mrf.mxu0
    %v887 = vadd.f32 %v750, %v886
    %888 = vmatmul.bf16.gmra.mxu0 %v385
    %v889 = vpop.f32.mrf.mxu0
    %v890 = vadd.f32 %v753, %v889
    %v891 = vpop.f32.mrf.mxu0
    %v892 = vadd.f32 %v755, %v891
    %893 = vmatmul.bf16.gmra.mxu0 %v386
    %v894 = vpop.f32.mrf.mxu0
    %v895 = vadd.f32 %v758, %v894
    %v896 = vpop.f32.mrf.mxu0
    %v897 = vadd.f32 %v760, %v896
    %898 = vmatmul.bf16.gmra.mxu0 %v387
    %v899 = vpop.f32.mrf.mxu0
    %v900 = vadd.f32 %v763, %v899
    %v901 = vpop.f32.mrf.mxu0
    %v902 = vadd.f32 %v765, %v901
    %903 = vdwg.mxu0
    %v904 = vld [vmem:[%s4] sm:$0x1]
    %v906 = vperm.slane %v904, 0
    %v908 = vadd.f32 %v825, %v906
    %v909 = vadd.f32 %v827, %v906
    %v910 = vadd.f32 %v830, %v906
    %v911 = vadd.f32 %v832, %v906
    %v912 = vadd.f32 %v835, %v906
    %v913 = vadd.f32 %v837, %v906
    %v914 = vadd.f32 %v840, %v906
    %v915 = vadd.f32 %v842, %v906
    %v916 = vadd.f32 %v845, %v906
    %v917 = vadd.f32 %v847, %v906
    %v918 = vadd.f32 %v850, %v906
    %v919 = vadd.f32 %v852, %v906
    %v920 = vadd.f32 %v855, %v906
    %v921 = vadd.f32 %v857, %v906
    %v922 = vadd.f32 %v860, %v906
    %v923 = vadd.f32 %v862, %v906
    %v924 = vadd.f32 %v865, %v906
    %v925 = vadd.f32 %v867, %v906
    %v926 = vadd.f32 %v870, %v906
    %v927 = vadd.f32 %v872, %v906
    %v928 = vadd.f32 %v875, %v906
    %v929 = vadd.f32 %v877, %v906
    %v930 = vadd.f32 %v880, %v906
    %v931 = vadd.f32 %v882, %v906
    %v932 = vadd.f32 %v885, %v906
    %v933 = vadd.f32 %v887, %v906
    %v934 = vadd.f32 %v890, %v906
    %v935 = vadd.f32 %v892, %v906
    %v936 = vadd.f32 %v895, %v906
    %v937 = vadd.f32 %v897, %v906
    %v938 = vadd.f32 %v900, %v906
    %v939 = vadd.f32 %v902, %v906
    %v940 = vmax.f32 %v908, 0.0
    %v941 = vmax.f32 %v909, 0.0
    %v942 = vmax.f32 %v910, 0.0
    %v943 = vmax.f32 %v911, 0.0
    %v944 = vmax.f32 %v912, 0.0
    %v945 = vmax.f32 %v913, 0.0
    %v946 = vmax.f32 %v914, 0.0
    %v947 = vmax.f32 %v915, 0.0
    %v948 = vmax.f32 %v916, 0.0
    %v949 = vmax.f32 %v917, 0.0
    %v950 = vmax.f32 %v918, 0.0
    %v951 = vmax.f32 %v919, 0.0
    %v952 = vmax.f32 %v920, 0.0
    %v953 = vmax.f32 %v921, 0.0
    %v954 = vmax.f32 %v922, 0.0
    %v955 = vmax.f32 %v923, 0.0
    %v956 = vmax.f32 %v924, 0.0
    %v957 = vmax.f32 %v925, 0.0
    %v958 = vmax.f32 %v926, 0.0
    %v959 = vmax.f32 %v927, 0.0
    %v960 = vmax.f32 %v928, 0.0
    %v961 = vmax.f32 %v929, 0.0
    %v962 = vmax.f32 %v930, 0.0
    %v963 = vmax.f32 %v931, 0.0
    %v964 = vmax.f32 %v932, 0.0
    %v965 = vmax.f32 %v933, 0.0
    %v966 = vmax.f32 %v934, 0.0
    %v967 = vmax.f32 %v935, 0.0
    %v968 = vmax.f32 %v936, 0.0
    %v969 = vmax.f32 %v937, 0.0
    %v970 = vmax.f32 %v938, 0.0
    %v971 = vmax.f32 %v939, 0.0
    %v972 = vpack.c.bf16 %v940, %v940
    %v973 = vpack.c.bf16 %v941, %v941
    %v974 = vpack.c.bf16 %v942, %v942
    %v975 = vpack.c.bf16 %v943, %v943
    %v976 = vpack.c.bf16 %v944, %v944
    %v977 = vpack.c.bf16 %v945, %v945
    %v978 = vpack.c.bf16 %v946, %v946
    %v979 = vpack.c.bf16 %v947, %v947
    %v980 = vpack.c.bf16 %v948, %v948
    %v981 = vpack.c.bf16 %v949, %v949
    %v982 = vpack.c.bf16 %v950, %v950
    %v983 = vpack.c.bf16 %v951, %v951
    %v984 = vpack.c.bf16 %v952, %v952
    %v985 = vpack.c.bf16 %v953, %v953
    %v986 = vpack.c.bf16 %v954, %v954
    %v987 = vpack.c.bf16 %v955, %v955
    %v988 = vpack.c.bf16 %v956, %v956
    %v989 = vpack.c.bf16 %v957, %v957
    %v990 = vpack.c.bf16 %v958, %v958
    %v991 = vpack.c.bf16 %v959, %v959
    %v992 = vpack.c.bf16 %v960, %v960
    %v993 = vpack.c.bf16 %v961, %v961
    %v994 = vpack.c.bf16 %v962, %v962
    %v995 = vpack.c.bf16 %v963, %v963
    %v996 = vpack.c.bf16 %v964, %v964
    %v997 = vpack.c.bf16 %v965, %v965
    %v998 = vpack.c.bf16 %v966, %v966
    %v999 = vpack.c.bf16 %v967, %v967
    %v1000 = vpack.c.bf16 %v968, %v968
    %v1001 = vpack.c.bf16 %v969, %v969
    %v1002 = vpack.c.bf16 %v970, %v970
    %v1003 = vpack.c.bf16 %v971, %v971
    %1004 = vst [vmem:[#allocation10] sm:$0xf] %v972
    %1005 = vst [vmem:[#allocation10 + $0x4] sm:$0xf] %v973
    %1006 = vst [vmem:[#allocation10 + $0x8] sm:$0xf] %v974
    %1007 = vst [vmem:[#allocation10 + $0xc] sm:$0xf] %v975
    %1008 = vst [vmem:[#allocation10 + $0x10] sm:$0xf] %v976
    %1009 = vst [vmem:[#allocation10 + $0x14] sm:$0xf] %v977
    %1010 = vst [vmem:[#allocation10 + $0x18] sm:$0xf] %v978
    %1011 = vst [vmem:[#allocation10 + $0x1c] sm:$0xf] %v979
    %1012 = vst [vmem:[#allocation10 + $0x20] sm:$0xf] %v980
    %1013 = vst [vmem:[#allocation10 + $0x24] sm:$0xf] %v981
    %1014 = vst [vmem:[#allocation10 + $0x28] sm:$0xf] %v982
    %1015 = vst [vmem:[#allocation10 + $0x2c] sm:$0xf] %v983
    %1016 = vst [vmem:[#allocation10 + $0x30] sm:$0xf] %v984
    %1017 = vst [vmem:[#allocation10 + $0x34] sm:$0xf] %v985
    %1018 = vst [vmem:[#allocation10 + $0x38] sm:$0xf] %v986
    %1019 = vst [vmem:[#allocation10 + $0x3c] sm:$0xf] %v987
    %1020 = vst [vmem:[#allocation10 + $0x40] sm:$0xf] %v988
    %1021 = vst [vmem:[#allocation10 + $0x44] sm:$0xf] %v989
    %1022 = vst [vmem:[#allocation10 + $0x48] sm:$0xf] %v990
    %1023 = vst [vmem:[#allocation10 + $0x4c] sm:$0xf] %v991
    %1024 = vst [vmem:[#allocation10 + $0x50] sm:$0xf] %v992
    %1025 = vst [vmem:[#allocation10 + $0x54] sm:$0xf] %v993
    %1026 = vst [vmem:[#allocation10 + $0x58] sm:$0xf] %v994
    %1027 = vst [vmem:[#allocation10 + $0x5c] sm:$0xf] %v995
    %1028 = vst [vmem:[#allocation10 + $0x60] sm:$0xf] %v996
    %1029 = vst [vmem:[#allocation10 + $0x64] sm:$0xf] %v997
    %1030 = vst [vmem:[#allocation10 + $0x68] sm:$0xf] %v998
    %1031 = vst [vmem:[#allocation10 + $0x6c] sm:$0xf] %v999
    %1032 = vst [vmem:[#allocation10 + $0x70] sm:$0xf] %v1000
    %1033 = vst [vmem:[#allocation10 + $0x74] sm:$0xf] %v1001
    %1034 = vst [vmem:[#allocation10 + $0x78] sm:$0xf] %v1002
    %1035 = vst [vmem:[#allocation10 + $0x7c] sm:$0xf] %v1003
    // Predicated region
    $region38: #{tpu_custom_call.1} parent=1 // pred_check
      _
    $region39: #{tpu_custom_call.1} parent=1 // pred_check_branch
      %1037 = sbr.rel (0) target = $region41
    $region40: #{tpu_custom_call.1} parent=1 // pred_region
      %1039 = vsyncadd [#allocation4], 0
      %s1040 = sshll.u32 [#allocation10], 4
      %s1041 = int_to_ptr.vmem [resolvable:$true] %s1040
      %s1042 = sshll.u32 %s5, 4
      %s1043 = int_to_ptr.hbm [resolvable:$true] %s1042
      %1048 = dma.vmem_to_hbm [thread:$0]  %s1041, 2048, %s1043, [#allocation4], 64, 64, 4
    $region41: #{tpu_custom_call.1} parent=1 // pred_fallthru
      _
    // Predicated region
    $region42: #{tpu_custom_call.1} parent=1 // pred_check
      _
    $region43: #{tpu_custom_call.1} parent=1 // pred_check_branch
      %1050 = sbr.rel (0) target = $region45
    $region44: #{tpu_custom_call.1} parent=1 // pred_region
      %1052 = dma.done [#allocation4], 2048
    $region45: #{tpu_custom_call.1} parent=1 // pred_fallthru
      _
    %1053 = vsyncpa [#allocation3], 1
    %1054 = vsyncpa [#allocation6], 1
    %1055 = vsyncpa [#allocation9], 1
    %1056 = vsyncpa [#allocation4], 1

</llo_original>
